<compile_context>
chip_gen: v7x
topology: tpu7x:2x2x1
jax: 0.10.0
libtpu: 0.0.40
codegen_flags: <defaults>
</compile_context>

<pallas_src>
import functools

import jax
import jax.numpy as jnp
from jax import lax
from jax.experimental import pallas as pl
from jax.experimental.pallas import tpu as pltpu


def _round_up(x, m):
    return ((x + m - 1) // m) * m


def basic_block_kernel(x_ref, w1_ref, b1_ref, w2_ref, b2_ref, wd_ref, bd_ref,
                       cm_ref, o_ref, h1z_ref, *,
                       P, Cin, Wo, L, Lpad, FL, stride):
    """One batch element per grid step; lane axis = zero-tail-padded Ho*Wo.

    stride == 1 (fused path):
      x_ref : (1, Cin, FL + Lpad + FL) bf16   zero-flanked flat input
    stride > 1 (prebuilt-patch fallback):
      x_ref : (1, 9*Cin, Lpad)         bf16   conv1 im2col patches (tap-major)
    w1_ref : (9, P, Cin) bf16   conv1 weights (BN1 scale folded), tap-major
    w2_ref : (9, P, P)   bf16   conv2 weights (BN2 scale folded), tap-major
    wd_ref : (P, Cin)    bf16   1x1 downsample weights (BNd scale folded)
    b*_ref : (P, 1)      f32    folded BatchNorm biases
    cm_ref : (3, Lpad)   bf16   per-kx column-validity masks (row 1 = tail mask)
    o_ref  : (1, P, Lpad) bf16  output tile
    h1z_ref: (P, FL + Lpad + FL) bf16 scratch (zero-flanked conv1 activation)
    """
    cm_left = cm_ref[0:1, :]     # valid unless col == 0        (kx = 0 taps)
    cm_right = cm_ref[2:3, :]    # valid unless col == Wo - 1   (kx = 2 taps)

    def col_mask(kx):
        if kx == 0:
            return cm_left
        if kx == 2:
            return cm_right
        return None

    taps9 = [(ky, kx) for ky in range(3) for kx in range(3)]

    # ---- conv1: 9 shifted dots accumulated in f32 on the MXU ----
    acc1 = jnp.zeros((P, Lpad), jnp.float32)
    for t, (ky, kx) in enumerate(taps9):
        if stride == 1:
            d = (ky - 1) * Wo + (kx - 1)
            tap = x_ref[0, :, FL + d:FL + d + Lpad]            # (Cin, Lpad)
            m = col_mask(kx)
            if m is not None:
                tap = tap * m                                  # zero column wraps
        else:
            tap = x_ref[0, t * Cin:(t + 1) * Cin, :]           # prebuilt patches
        acc1 = acc1 + jnp.dot(w1_ref[t], tap, preferred_element_type=jnp.float32)
    h1 = jnp.maximum(acc1 + b1_ref[...], 0.0).astype(jnp.bfloat16)
    if Lpad != L:                                              # static condition
        h1 = h1 * cm_ref[1:2, :]                               # zero padded tail

    # ---- stage h1 into the zero-flanked scratch for the conv2 flat shifts ----
    # (flanks re-zeroed every step: a program_id==0 guard is unsafe under
    #  megacore "parallel" splitting and the cost is only 2*P*FL bf16 stores)
    h1z_ref[:, 0:FL] = jnp.zeros((P, FL), jnp.bfloat16)
    h1z_ref[:, FL:FL + Lpad] = h1
    h1z_ref[:, FL + Lpad:FL + Lpad + FL] = jnp.zeros((P, FL), jnp.bfloat16)

    # ---- downsample (1x1 conv + BNd) + bn2 bias initialise the accumulator ----
    if stride == 1:
        xc = x_ref[0, :, FL:FL + Lpad]                         # x itself
    else:
        xc = x_ref[0, 4 * Cin:5 * Cin, :]                      # centre-tap rows
    acc = (jnp.dot(wd_ref[...], xc, preferred_element_type=jnp.float32)
           + bd_ref[...] + b2_ref[...])

    # ---- conv2: 9 shifted dots accumulated into the same f32 accumulator ----
    for t, (ky, kx) in enumerate(taps9):
        d = (ky - 1) * Wo + (kx - 1)
        tap = h1z_ref[:, FL + d:FL + d + Lpad]                 # (P, Lpad)
        m = col_mask(kx)
        if m is not None:
            tap = tap * m
        acc = acc + jnp.dot(w2_ref[t], tap, preferred_element_type=jnp.float32)

    # ---- residual relu, lane-dense bf16 store ----
    o_ref[0] = jnp.maximum(acc, 0.0).astype(o_ref.dtype)


def _fold_bn(gamma, beta, mean, var, eps=1e-5):
    scale = gamma / jnp.sqrt(var + eps)
    bias = beta - mean * scale
    return scale.astype(jnp.float32), bias.astype(jnp.float32)


def basic_block_forward(x_nchw, p, stride=1):
    """Pallas implementation of BasicBlock.forward (channel_attention=False)."""
    x = x_nchw.astype(jnp.float32)
    N, Cin, H, W = x.shape
    P = p['w1'].shape[-1]
    Ho = (H - 1) // stride + 1
    Wo = (W - 1) // stride + 1
    L = Ho * Wo
    Lpad = _round_up(L, 128)          # lane-dense output / unmasked stores
    FL = _round_up(Wo + 1, 128)       # zero flank must cover the +/-(Wo+1) shifts
    assert FL >= Wo + 1

    # --- fold BN into per-output-channel scale (into weights) and bias ---
    s1, b1 = _fold_bn(p['g1'], p['b1'], p['m1'], p['v1'])
    s2, b2 = _fold_bn(p['g2'], p['b2'], p['m2'], p['v2'])
    sd, bd = _fold_bn(p['gd'], p['bd'], p['md'], p['vd'])

    w1t = jnp.transpose(p['w1'] * s1[None, None, None, :], (0, 1, 3, 2)) \
             .reshape(9, P, Cin).astype(jnp.bfloat16)            # (9, P, Cin)
    w2t = jnp.transpose(p['w2'] * s2[None, None, None, :], (0, 1, 3, 2)) \
             .reshape(9, P, P).astype(jnp.bfloat16)              # (9, P, P)
    wdt = jnp.transpose(p['wd'] * sd[None, :], (1, 0)).astype(jnp.bfloat16)
    b1c, b2c, bdc = b1.reshape(P, 1), b2.reshape(P, 1), bd.reshape(P, 1)

    # --- per-kx column-validity masks; row 1 doubles as the valid-lane mask ---
    lidx = jnp.arange(Lpad, dtype=jnp.int32)
    col = lidx % Wo
    valid = lidx < L
    cmask = jnp.stack([(col >= 1) & valid,
                       valid,
                       (col <= Wo - 2) & valid]).astype(jnp.bfloat16)   # (3, Lpad)

    if stride == 1:
        # conv1 im2col happens inside the kernel: ship x once, zero-flanked.
        x_in = jnp.pad(x.reshape(N, Cin, L).astype(jnp.bfloat16),
                       ((0, 0), (0, 0), (FL, (Lpad - L) + FL)))
        x_block = (1, Cin, FL + Lpad + FL)
    else:
        # TODO(synk): wrapper-side im2col fallback (9x activation HBM traffic).
        xpad = jnp.pad(x, ((0, 0), (0, 0), (1, 1), (1, 1)))
        taps = []
        for ky in range(3):
            for kx in range(3):
                win = lax.slice(
                    xpad, (0, 0, ky, kx),
                    (N, Cin, ky + stride * (Ho - 1) + 1, kx + stride * (Wo - 1) + 1),
                    (1, 1, stride, stride))
                taps.append(win.reshape(N, Cin, L))
        x_in = jnp.pad(jnp.concatenate(taps, axis=1).astype(jnp.bfloat16),
                       ((0, 0), (0, 0), (0, Lpad - L)))
        x_block = (1, 9 * Cin, Lpad)

    kernel = functools.partial(basic_block_kernel, P=P, Cin=Cin, Wo=Wo, L=L,
                               Lpad=Lpad, FL=FL, stride=stride)

    flops = 2 * N * Lpad * P * (9 * Cin + 9 * P + Cin)
    bytes_accessed = (x_in.size * 2 + w1t.size * 2 + w2t.size * 2 + wdt.size * 2
                      + cmask.size * 2 + 3 * P * 4 + N * P * Lpad * 2)

    # VMEM working-set estimate: double-buffered x/out blocks + (double-buffered)
    # invariant weights/masks + the flanked h1 scratch.
    x_blk = x_block[0] * x_block[1] * x_block[2]
    vmem_est = (2 * (x_blk * 2 + P * Lpad * 2)
                + 2 * ((w1t.size + w2t.size + wdt.size + cmask.size) * 2 + 3 * P * 4)
                + P * (Lpad + 2 * FL) * 2)
    vmem_limit = int(min(96 * 2 ** 20, max(32 * 2 ** 20, 2 * vmem_est)))

    out_flat = pl.pallas_call(
        kernel,
        out_shape=jax.ShapeDtypeStruct((N, P, Lpad), jnp.bfloat16),
        grid_spec=pltpu.PrefetchScalarGridSpec(
            num_scalar_prefetch=0,
            grid=(N,),
            in_specs=[
                pl.BlockSpec(x_block, lambda n: (n, 0, 0)),            # x
                pl.BlockSpec((9, P, Cin), lambda n: (0, 0, 0)),        # w1t
                pl.BlockSpec((P, 1), lambda n: (0, 0)),                # b1
                pl.BlockSpec((9, P, P), lambda n: (0, 0, 0)),          # w2t
                pl.BlockSpec((P, 1), lambda n: (0, 0)),                # b2
                pl.BlockSpec((P, Cin), lambda n: (0, 0)),              # wdt
                pl.BlockSpec((P, 1), lambda n: (0, 0)),                # bd
                pl.BlockSpec((3, Lpad), lambda n: (0, 0)),             # col masks
            ],
            out_specs=pl.BlockSpec((1, P, Lpad), lambda n: (n, 0, 0)),
            scratch_shapes=[pltpu.VMEM((P, Lpad + 2 * FL), jnp.bfloat16)],
        ),
        compiler_params=pltpu.CompilerParams(
            dimension_semantics=("parallel",),
            vmem_limit_bytes=vmem_limit),
        cost_estimate=pl.CostEstimate(flops=flops, transcendentals=0,
                                      bytes_accessed=bytes_accessed),
    )(x_in, w1t, b1c, w2t, b2c, wdt, bdc, cmask)

    return out_flat[:, :, :L].reshape(N, P, Ho, Wo)                    # NCHW bf16


def basic_block_reference(x_nchw, p, stride=1, eps=1e-5):
    """Pure-JAX f32 reference mirroring the PyTorch forward (eval-mode BN)."""
    def conv(x, w_hwio, s, pad):
        return lax.conv_general_dilated(
            x, w_hwio, (s, s), [(pad, pad), (pad, pad)],
            dimension_numbers=('NHWC', 'HWIO', 'NHWC'))

    def bn(x, g, b, m, v):
        return (x - m) / jnp.sqrt(v + eps) * g + b

    x = jnp.transpose(x_nchw, (0, 2, 3, 1)).astype(jnp.float32)
    h = jax.nn.relu(bn(conv(x, p['w1'], stride, 1), p['g1'], p['b1'], p['m1'], p['v1']))
    h = bn(conv(h, p['w2'], 1, 1), p['g2'], p['b2'], p['m2'], p['v2'])
    idn = bn(conv(x, p['wd'].reshape(1, 1, *p['wd'].shape), stride, 0),
             p['gd'], p['bd'], p['md'], p['vd'])
    out = jax.nn.relu(h + idn)
    return jnp.transpose(out, (0, 3, 1, 2))


def init_params(key, inplanes, planes):
    ks = jax.random.split(key, 15)

    def bn_params(k0, k1, k2, k3):
        return (jax.random.uniform(k0, (planes,), jnp.float32, 0.5, 1.5),   # gamma
                jax.random.normal(k1, (planes,), jnp.float32) * 0.1,        # beta
                jax.random.normal(k2, (planes,), jnp.float32) * 0.1,        # running mean
                jax.random.uniform(k3, (planes,), jnp.float32, 0.5, 1.5))   # running var

    g1, b1, m1, v1 = bn_params(ks[1], ks[2], ks[3], ks[4])
    g2, b2, m2, v2 = bn_params(ks[6], ks[7], ks[8], ks[9])
    gd, bd, md, vd = bn_params(ks[11], ks[12], ks[13], ks[14])
    return {
        'w1': jax.random.normal(ks[0], (3, 3, inplanes, planes), jnp.float32) * 0.1,
        'g1': g1, 'b1': b1, 'm1': m1, 'v1': v1,
        'w2': jax.random.normal(ks[5], (3, 3, planes, planes), jnp.float32) * 0.1,
        'g2': g2, 'b2': b2, 'm2': m2, 'v2': v2,
        'wd': jax.random.normal(ks[10], (inplanes, planes), jnp.float32) * 0.1,
        'gd': gd, 'bd': bd, 'md': md, 'vd': vd,
    }


if __name__ == "__main__":
    key = jax.random.PRNGKey(0)
    k_x, k_p = jax.random.split(key)

    N, INPLANES, PLANES, H, W, STRIDE = 2, 4, 8, 16, 16, 1
    x = jax.random.normal(k_x, (N, INPLANES, H, W), jnp.float32)  # NCHW like PyTorch
    params = init_params(k_p, INPLANES, PLANES)

    out = jax.block_until_ready(basic_block_forward(x, params, stride=STRIDE))
    ref = jax.block_until_ready(basic_block_reference(x, params, stride=STRIDE))

    assert out.shape == (N, PLANES, H // STRIDE, W // STRIDE), out.shape
    # bf16 weights/activations/output (f32 accumulation) vs the f32 reference.
    err = jnp.abs(out.astype(jnp.float32) - ref)
    tol = 5e-2 + 5e-2 * jnp.abs(ref)
    assert bool(jnp.all(err <= tol)), \
        f"mismatch vs reference: max abs err {float(jnp.max(err))}"

    print("KERNEL_OK")
</pallas_src>

<mosaic_0001>
module attributes {stable_mosaic.version = 11 : i64} {
  func.func @basic_block_kernel(%arg0: i32, %arg1: memref<1x4x512xbf16, #tpu.memory_space<vmem>>, %arg2: memref<9x8x4xbf16, #tpu.memory_space<vmem>>, %arg3: memref<8x1xf32, #tpu.memory_space<vmem>>, %arg4: memref<9x8x8xbf16, #tpu.memory_space<vmem>>, %arg5: memref<8x1xf32, #tpu.memory_space<vmem>>, %arg6: memref<8x4xbf16, #tpu.memory_space<vmem>>, %arg7: memref<8x1xf32, #tpu.memory_space<vmem>>, %arg8: memref<3x256xbf16, #tpu.memory_space<vmem>>, %arg9: memref<1x8x256xbf16, #tpu.memory_space<vmem>>, %arg10: memref<8x512xbf16, #tpu.memory_space<vmem>>) attributes {dimension_semantics = [#tpu.dimension_semantics<parallel>], iteration_bounds = array<i64: 2>, scalar_prefetch = 0 : i64, scratch_operands = 1 : i64, tpu.core_type = #tpu.core_type<tc>, window_params = [{transform_indices = @transform_0, window_bounds = array<i64: 1, 4, 512>}, {pipeline_mode = #tpu.pipeline_mode<synchronous>, transform_indices = @transform_1, window_bounds = array<i64: 9, 8, 4>}, {pipeline_mode = #tpu.pipeline_mode<synchronous>, transform_indices = @transform_2, window_bounds = array<i64: 8, 1>}, {pipeline_mode = #tpu.pipeline_mode<synchronous>, transform_indices = @transform_3, window_bounds = array<i64: 9, 8, 8>}, {pipeline_mode = #tpu.pipeline_mode<synchronous>, transform_indices = @transform_4, window_bounds = array<i64: 8, 1>}, {pipeline_mode = #tpu.pipeline_mode<synchronous>, transform_indices = @transform_5, window_bounds = array<i64: 8, 4>}, {pipeline_mode = #tpu.pipeline_mode<synchronous>, transform_indices = @transform_6, window_bounds = array<i64: 8, 1>}, {pipeline_mode = #tpu.pipeline_mode<synchronous>, transform_indices = @transform_7, window_bounds = array<i64: 3, 256>}, {transform_indices = @transform_8, window_bounds = array<i64: 1, 8, 256>}]} {
    %c0 = arith.constant 0 : index
    %c0_0 = arith.constant 0 : index
    %0 = vector.load %arg8[%c0, %c0_0] : memref<3x256xbf16, #tpu.memory_space<vmem>>, vector<1x256xbf16>
    %c2 = arith.constant 2 : index
    %c0_1 = arith.constant 0 : index
    %1 = vector.load %arg8[%c2, %c0_1] : memref<3x256xbf16, #tpu.memory_space<vmem>>, vector<1x256xbf16>
    %cst = arith.constant 0.000000e+00 : f32
    %2 = vector.broadcast %cst : f32 to vector<8x256xf32>
    %c0_2 = arith.constant 0 : index
    %c0_3 = arith.constant 0 : index
    %c111 = arith.constant 111 : index
    %3 = vector.load %arg1[%c0_2, %c0_3, %c111] : memref<1x4x512xbf16, #tpu.memory_space<vmem>>, vector<1x4x256xbf16>
    %4 = vector.shape_cast %3 : vector<1x4x256xbf16> to vector<4x256xbf16>
    %5 = vector.broadcast %0 : vector<1x256xbf16> to vector<4x256xbf16>
    %6 = arith.mulf %4, %5 : vector<4x256xbf16>
    %c0_4 = arith.constant 0 : index
    %c0_5 = arith.constant 0 : index
    %c0_6 = arith.constant 0 : index
    %7 = vector.load %arg2[%c0_4, %c0_5, %c0_6] : memref<9x8x4xbf16, #tpu.memory_space<vmem>>, vector<1x8x4xbf16>
    %8 = vector.shape_cast %7 : vector<1x8x4xbf16> to vector<8x4xbf16>
    %cst_7 = arith.constant dense<0.000000e+00> : vector<8x256xf32>
    %9 = tpu.matmul %8, %6, %cst_7 {dimension_numbers = #tpu.dot_dimension_numbers<[1], [0], [0], [1], [0, 0, 1, 1], [], []>} : vector<8x4xbf16>, vector<4x256xbf16>, vector<8x256xf32> -> vector<8x256xf32>
    %10 = arith.addf %2, %9 : vector<8x256xf32>
    %c0_8 = arith.constant 0 : index
    %c0_9 = arith.constant 0 : index
    %c112 = arith.constant 112 : index
    %11 = vector.load %arg1[%c0_8, %c0_9, %c112] : memref<1x4x512xbf16, #tpu.memory_space<vmem>>, vector<1x4x256xbf16>
    %12 = vector.shape_cast %11 : vector<1x4x256xbf16> to vector<4x256xbf16>
    %c1 = arith.constant 1 : index
    %c0_10 = arith.constant 0 : index
    %c0_11 = arith.constant 0 : index
    %13 = vector.load %arg2[%c1, %c0_10, %c0_11] : memref<9x8x4xbf16, #tpu.memory_space<vmem>>, vector<1x8x4xbf16>
    %14 = vector.shape_cast %13 : vector<1x8x4xbf16> to vector<8x4xbf16>
    %cst_12 = arith.constant dense<0.000000e+00> : vector<8x256xf32>
    %15 = tpu.matmul %14, %12, %cst_12 {dimension_numbers = #tpu.dot_dimension_numbers<[1], [0], [0], [1], [0, 0, 1, 1], [], []>} : vector<8x4xbf16>, vector<4x256xbf16>, vector<8x256xf32> -> vector<8x256xf32>
    %16 = arith.addf %10, %15 : vector<8x256xf32>
    %c0_13 = arith.constant 0 : index
    %c0_14 = arith.constant 0 : index
    %c113 = arith.constant 113 : index
    %17 = vector.load %arg1[%c0_13, %c0_14, %c113] : memref<1x4x512xbf16, #tpu.memory_space<vmem>>, vector<1x4x256xbf16>
    %18 = vector.shape_cast %17 : vector<1x4x256xbf16> to vector<4x256xbf16>
    %19 = vector.broadcast %1 : vector<1x256xbf16> to vector<4x256xbf16>
    %20 = arith.mulf %18, %19 : vector<4x256xbf16>
    %c2_15 = arith.constant 2 : index
    %c0_16 = arith.constant 0 : index
    %c0_17 = arith.constant 0 : index
    %21 = vector.load %arg2[%c2_15, %c0_16, %c0_17] : memref<9x8x4xbf16, #tpu.memory_space<vmem>>, vector<1x8x4xbf16>
    %22 = vector.shape_cast %21 : vector<1x8x4xbf16> to vector<8x4xbf16>
    %cst_18 = arith.constant dense<0.000000e+00> : vector<8x256xf32>
    %23 = tpu.matmul %22, %20, %cst_18 {dimension_numbers = #tpu.dot_dimension_numbers<[1], [0], [0], [1], [0, 0, 1, 1], [], []>} : vector<8x4xbf16>, vector<4x256xbf16>, vector<8x256xf32> -> vector<8x256xf32>
    %24 = arith.addf %16, %23 : vector<8x256xf32>
    %c0_19 = arith.constant 0 : index
    %c0_20 = arith.constant 0 : index
    %c127 = arith.constant 127 : index
    %25 = vector.load %arg1[%c0_19, %c0_20, %c127] : memref<1x4x512xbf16, #tpu.memory_space<vmem>>, vector<1x4x256xbf16>
    %26 = vector.shape_cast %25 : vector<1x4x256xbf16> to vector<4x256xbf16>
    %27 = vector.broadcast %0 : vector<1x256xbf16> to vector<4x256xbf16>
    %28 = arith.mulf %26, %27 : vector<4x256xbf16>
    %c3 = arith.constant 3 : index
    %c0_21 = arith.constant 0 : index
    %c0_22 = arith.constant 0 : index
    %29 = vector.load %arg2[%c3, %c0_21, %c0_22] : memref<9x8x4xbf16, #tpu.memory_space<vmem>>, vector<1x8x4xbf16>
    %30 = vector.shape_cast %29 : vector<1x8x4xbf16> to vector<8x4xbf16>
    %cst_23 = arith.constant dense<0.000000e+00> : vector<8x256xf32>
    %31 = tpu.matmul %30, %28, %cst_23 {dimension_numbers = #tpu.dot_dimension_numbers<[1], [0], [0], [1], [0, 0, 1, 1], [], []>} : vector<8x4xbf16>, vector<4x256xbf16>, vector<8x256xf32> -> vector<8x256xf32>
    %32 = arith.addf %24, %31 : vector<8x256xf32>
    %c0_24 = arith.constant 0 : index
    %c0_25 = arith.constant 0 : index
    %c128 = arith.constant 128 : index
    %33 = vector.load %arg1[%c0_24, %c0_25, %c128] : memref<1x4x512xbf16, #tpu.memory_space<vmem>>, vector<1x4x256xbf16>
    %34 = vector.shape_cast %33 : vector<1x4x256xbf16> to vector<4x256xbf16>
    %c4 = arith.constant 4 : index
    %c0_26 = arith.constant 0 : index
    %c0_27 = arith.constant 0 : index
    %35 = vector.load %arg2[%c4, %c0_26, %c0_27] : memref<9x8x4xbf16, #tpu.memory_space<vmem>>, vector<1x8x4xbf16>
    %36 = vector.shape_cast %35 : vector<1x8x4xbf16> to vector<8x4xbf16>
    %cst_28 = arith.constant dense<0.000000e+00> : vector<8x256xf32>
    %37 = tpu.matmul %36, %34, %cst_28 {dimension_numbers = #tpu.dot_dimension_numbers<[1], [0], [0], [1], [0, 0, 1, 1], [], []>} : vector<8x4xbf16>, vector<4x256xbf16>, vector<8x256xf32> -> vector<8x256xf32>
    %38 = arith.addf %32, %37 : vector<8x256xf32>
    %c0_29 = arith.constant 0 : index
    %c0_30 = arith.constant 0 : index
    %c129 = arith.constant 129 : index
    %39 = vector.load %arg1[%c0_29, %c0_30, %c129] : memref<1x4x512xbf16, #tpu.memory_space<vmem>>, vector<1x4x256xbf16>
    %40 = vector.shape_cast %39 : vector<1x4x256xbf16> to vector<4x256xbf16>
    %41 = vector.broadcast %1 : vector<1x256xbf16> to vector<4x256xbf16>
    %42 = arith.mulf %40, %41 : vector<4x256xbf16>
    %c5 = arith.constant 5 : index
    %c0_31 = arith.constant 0 : index
    %c0_32 = arith.constant 0 : index
    %43 = vector.load %arg2[%c5, %c0_31, %c0_32] : memref<9x8x4xbf16, #tpu.memory_space<vmem>>, vector<1x8x4xbf16>
    %44 = vector.shape_cast %43 : vector<1x8x4xbf16> to vector<8x4xbf16>
    %cst_33 = arith.constant dense<0.000000e+00> : vector<8x256xf32>
    %45 = tpu.matmul %44, %42, %cst_33 {dimension_numbers = #tpu.dot_dimension_numbers<[1], [0], [0], [1], [0, 0, 1, 1], [], []>} : vector<8x4xbf16>, vector<4x256xbf16>, vector<8x256xf32> -> vector<8x256xf32>
    %46 = arith.addf %38, %45 : vector<8x256xf32>
    %c0_34 = arith.constant 0 : index
    %c0_35 = arith.constant 0 : index
    %c143 = arith.constant 143 : index
    %47 = vector.load %arg1[%c0_34, %c0_35, %c143] : memref<1x4x512xbf16, #tpu.memory_space<vmem>>, vector<1x4x256xbf16>
    %48 = vector.shape_cast %47 : vector<1x4x256xbf16> to vector<4x256xbf16>
    %49 = vector.broadcast %0 : vector<1x256xbf16> to vector<4x256xbf16>
    %50 = arith.mulf %48, %49 : vector<4x256xbf16>
    %c6 = arith.constant 6 : index
    %c0_36 = arith.constant 0 : index
    %c0_37 = arith.constant 0 : index
    %51 = vector.load %arg2[%c6, %c0_36, %c0_37] : memref<9x8x4xbf16, #tpu.memory_space<vmem>>, vector<1x8x4xbf16>
    %52 = vector.shape_cast %51 : vector<1x8x4xbf16> to vector<8x4xbf16>
    %cst_38 = arith.constant dense<0.000000e+00> : vector<8x256xf32>
    %53 = tpu.matmul %52, %50, %cst_38 {dimension_numbers = #tpu.dot_dimension_numbers<[1], [0], [0], [1], [0, 0, 1, 1], [], []>} : vector<8x4xbf16>, vector<4x256xbf16>, vector<8x256xf32> -> vector<8x256xf32>
    %54 = arith.addf %46, %53 : vector<8x256xf32>
    %c0_39 = arith.constant 0 : index
    %c0_40 = arith.constant 0 : index
    %c144 = arith.constant 144 : index
    %55 = vector.load %arg1[%c0_39, %c0_40, %c144] : memref<1x4x512xbf16, #tpu.memory_space<vmem>>, vector<1x4x256xbf16>
    %56 = vector.shape_cast %55 : vector<1x4x256xbf16> to vector<4x256xbf16>
    %c7 = arith.constant 7 : index
    %c0_41 = arith.constant 0 : index
    %c0_42 = arith.constant 0 : index
    %57 = vector.load %arg2[%c7, %c0_41, %c0_42] : memref<9x8x4xbf16, #tpu.memory_space<vmem>>, vector<1x8x4xbf16>
    %58 = vector.shape_cast %57 : vector<1x8x4xbf16> to vector<8x4xbf16>
    %cst_43 = arith.constant dense<0.000000e+00> : vector<8x256xf32>
    %59 = tpu.matmul %58, %56, %cst_43 {dimension_numbers = #tpu.dot_dimension_numbers<[1], [0], [0], [1], [0, 0, 1, 1], [], []>} : vector<8x4xbf16>, vector<4x256xbf16>, vector<8x256xf32> -> vector<8x256xf32>
    %60 = arith.addf %54, %59 : vector<8x256xf32>
    %c0_44 = arith.constant 0 : index
    %c0_45 = arith.constant 0 : index
    %c145 = arith.constant 145 : index
    %61 = vector.load %arg1[%c0_44, %c0_45, %c145] : memref<1x4x512xbf16, #tpu.memory_space<vmem>>, vector<1x4x256xbf16>
    %62 = vector.shape_cast %61 : vector<1x4x256xbf16> to vector<4x256xbf16>
    %63 = vector.broadcast %1 : vector<1x256xbf16> to vector<4x256xbf16>
    %64 = arith.mulf %62, %63 : vector<4x256xbf16>
    %c8 = arith.constant 8 : index
    %c0_46 = arith.constant 0 : index
    %c0_47 = arith.constant 0 : index
    %65 = vector.load %arg2[%c8, %c0_46, %c0_47] : memref<9x8x4xbf16, #tpu.memory_space<vmem>>, vector<1x8x4xbf16>
    %66 = vector.shape_cast %65 : vector<1x8x4xbf16> to vector<8x4xbf16>
    %cst_48 = arith.constant dense<0.000000e+00> : vector<8x256xf32>
    %67 = tpu.matmul %66, %64, %cst_48 {dimension_numbers = #tpu.dot_dimension_numbers<[1], [0], [0], [1], [0, 0, 1, 1], [], []>} : vector<8x4xbf16>, vector<4x256xbf16>, vector<8x256xf32> -> vector<8x256xf32>
    %68 = arith.addf %60, %67 : vector<8x256xf32>
    %c0_49 = arith.constant 0 : index
    %c0_50 = arith.constant 0 : index
    %69 = vector.load %arg3[%c0_49, %c0_50] : memref<8x1xf32, #tpu.memory_space<vmem>>, vector<8x1xf32>
    %70 = vector.broadcast %69 : vector<8x1xf32> to vector<8x256xf32>
    %71 = arith.addf %68, %70 : vector<8x256xf32>
    %cst_51 = arith.constant 0.000000e+00 : f32
    %72 = vector.broadcast %cst_51 : f32 to vector<8x256xf32>
    %73 = arith.maximumf %71, %72 : vector<8x256xf32>
    %74 = arith.truncf %73 : vector<8x256xf32> to vector<8x256xbf16>
    %cst_52 = arith.constant 0.000000e+00 : bf16
    %75 = vector.broadcast %cst_52 : bf16 to vector<8x128xbf16>
    %c0_53 = arith.constant 0 : index
    %c0_54 = arith.constant 0 : index
    %76 = vector.load %arg10[%c0_53, %c0_54] : memref<8x512xbf16, #tpu.memory_space<vmem>>, vector<8x128xbf16>
    tpu.vector_store %arg10[%c0_53, %c0_54], %75 {strides = array<i32>} : memref<8x512xbf16, #tpu.memory_space<vmem>>, vector<8x128xbf16>,
    %c0_55 = arith.constant 0 : index
    %c128_56 = arith.constant 128 : index
    %77 = vector.load %arg10[%c0_55, %c128_56] : memref<8x512xbf16, #tpu.memory_space<vmem>>, vector<8x256xbf16>
    tpu.vector_store %arg10[%c0_55, %c128_56], %74 {strides = array<i32>} : memref<8x512xbf16, #tpu.memory_space<vmem>>, vector<8x256xbf16>,
    %cst_57 = arith.constant 0.000000e+00 : bf16
    %78 = vector.broadcast %cst_57 : bf16 to vector<8x128xbf16>
    %c0_58 = arith.constant 0 : index
    %c384 = arith.constant 384 : index
    %79 = vector.load %arg10[%c0_58, %c384] : memref<8x512xbf16, #tpu.memory_space<vmem>>, vector<8x128xbf16>
    tpu.vector_store %arg10[%c0_58, %c384], %78 {strides = array<i32>} : memref<8x512xbf16, #tpu.memory_space<vmem>>, vector<8x128xbf16>,
    %c0_59 = arith.constant 0 : index
    %c0_60 = arith.constant 0 : index
    %c128_61 = arith.constant 128 : index
    %80 = vector.load %arg1[%c0_59, %c0_60, %c128_61] : memref<1x4x512xbf16, #tpu.memory_space<vmem>>, vector<1x4x256xbf16>
    %81 = vector.shape_cast %80 : vector<1x4x256xbf16> to vector<4x256xbf16>
    %c0_62 = arith.constant 0 : index
    %c0_63 = arith.constant 0 : index
    %82 = vector.load %arg6[%c0_62, %c0_63] : memref<8x4xbf16, #tpu.memory_space<vmem>>, vector<8x4xbf16>
    %cst_64 = arith.constant dense<0.000000e+00> : vector<8x256xf32>
    %83 = tpu.matmul %82, %81, %cst_64 {dimension_numbers = #tpu.dot_dimension_numbers<[1], [0], [0], [1], [0, 0, 1, 1], [], []>} : vector<8x4xbf16>, vector<4x256xbf16>, vector<8x256xf32> -> vector<8x256xf32>
    %c0_65 = arith.constant 0 : index
    %c0_66 = arith.constant 0 : index
    %84 = vector.load %arg7[%c0_65, %c0_66] : memref<8x1xf32, #tpu.memory_space<vmem>>, vector<8x1xf32>
    %85 = vector.broadcast %84 : vector<8x1xf32> to vector<8x256xf32>
    %86 = arith.addf %83, %85 : vector<8x256xf32>
    %c0_67 = arith.constant 0 : index
    %c0_68 = arith.constant 0 : index
    %87 = vector.load %arg5[%c0_67, %c0_68] : memref<8x1xf32, #tpu.memory_space<vmem>>, vector<8x1xf32>
    %88 = vector.broadcast %87 : vector<8x1xf32> to vector<8x256xf32>
    %89 = arith.addf %86, %88 : vector<8x256xf32>
    %c0_69 = arith.constant 0 : index
    %c111_70 = arith.constant 111 : index
    %90 = vector.load %arg10[%c0_69, %c111_70] : memref<8x512xbf16, #tpu.memory_space<vmem>>, vector<8x256xbf16>
    %91 = vector.broadcast %0 : vector<1x256xbf16> to vector<8x256xbf16>
    %92 = arith.mulf %90, %91 : vector<8x256xbf16>
    %c0_71 = arith.constant 0 : index
    %c0_72 = arith.constant 0 : index
    %c0_73 = arith.constant 0 : index
    %93 = vector.load %arg4[%c0_71, %c0_72, %c0_73] : memref<9x8x8xbf16, #tpu.memory_space<vmem>>, vector<1x8x8xbf16>
    %94 = vector.shape_cast %93 : vector<1x8x8xbf16> to vector<8x8xbf16>
    %cst_74 = arith.constant dense<0.000000e+00> : vector<8x256xf32>
    %95 = tpu.matmul %94, %92, %cst_74 {dimension_numbers = #tpu.dot_dimension_numbers<[1], [0], [0], [1], [0, 0, 1, 1], [], []>} : vector<8x8xbf16>, vector<8x256xbf16>, vector<8x256xf32> -> vector<8x256xf32>
    %96 = arith.addf %89, %95 : vector<8x256xf32>
    %c0_75 = arith.constant 0 : index
    %c112_76 = arith.constant 112 : index
    %97 = vector.load %arg10[%c0_75, %c112_76] : memref<8x512xbf16, #tpu.memory_space<vmem>>, vector<8x256xbf16>
    %c1_77 = arith.constant 1 : index
    %c0_78 = arith.constant 0 : index
    %c0_79 = arith.constant 0 : index
    %98 = vector.load %arg4[%c1_77, %c0_78, %c0_79] : memref<9x8x8xbf16, #tpu.memory_space<vmem>>, vector<1x8x8xbf16>
    %99 = vector.shape_cast %98 : vector<1x8x8xbf16> to vector<8x8xbf16>
    %cst_80 = arith.constant dense<0.000000e+00> : vector<8x256xf32>
    %100 = tpu.matmul %99, %97, %cst_80 {dimension_numbers = #tpu.dot_dimension_numbers<[1], [0], [0], [1], [0, 0, 1, 1], [], []>} : vector<8x8xbf16>, vector<8x256xbf16>, vector<8x256xf32> -> vector<8x256xf32>
    %101 = arith.addf %96, %100 : vector<8x256xf32>
    %c0_81 = arith.constant 0 : index
    %c113_82 = arith.constant 113 : index
    %102 = vector.load %arg10[%c0_81, %c113_82] : memref<8x512xbf16, #tpu.memory_space<vmem>>, vector<8x256xbf16>
    %103 = vector.broadcast %1 : vector<1x256xbf16> to vector<8x256xbf16>
    %104 = arith.mulf %102, %103 : vector<8x256xbf16>
    %c2_83 = arith.constant 2 : index
    %c0_84 = arith.constant 0 : index
    %c0_85 = arith.constant 0 : index
    %105 = vector.load %arg4[%c2_83, %c0_84, %c0_85] : memref<9x8x8xbf16, #tpu.memory_space<vmem>>, vector<1x8x8xbf16>
    %106 = vector.shape_cast %105 : vector<1x8x8xbf16> to vector<8x8xbf16>
    %cst_86 = arith.constant dense<0.000000e+00> : vector<8x256xf32>
    %107 = tpu.matmul %106, %104, %cst_86 {dimension_numbers = #tpu.dot_dimension_numbers<[1], [0], [0], [1], [0, 0, 1, 1], [], []>} : vector<8x8xbf16>, vector<8x256xbf16>, vector<8x256xf32> -> vector<8x256xf32>
    %108 = arith.addf %101, %107 : vector<8x256xf32>
    %c0_87 = arith.constant 0 : index
    %c127_88 = arith.constant 127 : index
    %109 = vector.load %arg10[%c0_87, %c127_88] : memref<8x512xbf16, #tpu.memory_space<vmem>>, vector<8x256xbf16>
    %110 = vector.broadcast %0 : vector<1x256xbf16> to vector<8x256xbf16>
    %111 = arith.mulf %109, %110 : vector<8x256xbf16>
    %c3_89 = arith.constant 3 : index
    %c0_90 = arith.constant 0 : index
    %c0_91 = arith.constant 0 : index
    %112 = vector.load %arg4[%c3_89, %c0_90, %c0_91] : memref<9x8x8xbf16, #tpu.memory_space<vmem>>, vector<1x8x8xbf16>
    %113 = vector.shape_cast %112 : vector<1x8x8xbf16> to vector<8x8xbf16>
    %cst_92 = arith.constant dense<0.000000e+00> : vector<8x256xf32>
    %114 = tpu.matmul %113, %111, %cst_92 {dimension_numbers = #tpu.dot_dimension_numbers<[1], [0], [0], [1], [0, 0, 1, 1], [], []>} : vector<8x8xbf16>, vector<8x256xbf16>, vector<8x256xf32> -> vector<8x256xf32>
    %115 = arith.addf %108, %114 : vector<8x256xf32>
    %c0_93 = arith.constant 0 : index
    %c128_94 = arith.constant 128 : index
    %116 = vector.load %arg10[%c0_93, %c128_94] : memref<8x512xbf16, #tpu.memory_space<vmem>>, vector<8x256xbf16>
    %c4_95 = arith.constant 4 : index
    %c0_96 = arith.constant 0 : index
    %c0_97 = arith.constant 0 : index
    %117 = vector.load %arg4[%c4_95, %c0_96, %c0_97] : memref<9x8x8xbf16, #tpu.memory_space<vmem>>, vector<1x8x8xbf16>
    %118 = vector.shape_cast %117 : vector<1x8x8xbf16> to vector<8x8xbf16>
    %cst_98 = arith.constant dense<0.000000e+00> : vector<8x256xf32>
    %119 = tpu.matmul %118, %116, %cst_98 {dimension_numbers = #tpu.dot_dimension_numbers<[1], [0], [0], [1], [0, 0, 1, 1], [], []>} : vector<8x8xbf16>, vector<8x256xbf16>, vector<8x256xf32> -> vector<8x256xf32>
    %120 = arith.addf %115, %119 : vector<8x256xf32>
    %c0_99 = arith.constant 0 : index
    %c129_100 = arith.constant 129 : index
    %121 = vector.load %arg10[%c0_99, %c129_100] : memref<8x512xbf16, #tpu.memory_space<vmem>>, vector<8x256xbf16>
    %122 = vector.broadcast %1 : vector<1x256xbf16> to vector<8x256xbf16>
    %123 = arith.mulf %121, %122 : vector<8x256xbf16>
    %c5_101 = arith.constant 5 : index
    %c0_102 = arith.constant 0 : index
    %c0_103 = arith.constant 0 : index
    %124 = vector.load %arg4[%c5_101, %c0_102, %c0_103] : memref<9x8x8xbf16, #tpu.memory_space<vmem>>, vector<1x8x8xbf16>
    %125 = vector.shape_cast %124 : vector<1x8x8xbf16> to vector<8x8xbf16>
    %cst_104 = arith.constant dense<0.000000e+00> : vector<8x256xf32>
    %126 = tpu.matmul %125, %123, %cst_104 {dimension_numbers = #tpu.dot_dimension_numbers<[1], [0], [0], [1], [0, 0, 1, 1], [], []>} : vector<8x8xbf16>, vector<8x256xbf16>, vector<8x256xf32> -> vector<8x256xf32>
    %127 = arith.addf %120, %126 : vector<8x256xf32>
    %c0_105 = arith.constant 0 : index
    %c143_106 = arith.constant 143 : index
    %128 = vector.load %arg10[%c0_105, %c143_106] : memref<8x512xbf16, #tpu.memory_space<vmem>>, vector<8x256xbf16>
    %129 = vector.broadcast %0 : vector<1x256xbf16> to vector<8x256xbf16>
    %130 = arith.mulf %128, %129 : vector<8x256xbf16>
    %c6_107 = arith.constant 6 : index
    %c0_108 = arith.constant 0 : index
    %c0_109 = arith.constant 0 : index
    %131 = vector.load %arg4[%c6_107, %c0_108, %c0_109] : memref<9x8x8xbf16, #tpu.memory_space<vmem>>, vector<1x8x8xbf16>
    %132 = vector.shape_cast %131 : vector<1x8x8xbf16> to vector<8x8xbf16>
    %cst_110 = arith.constant dense<0.000000e+00> : vector<8x256xf32>
    %133 = tpu.matmul %132, %130, %cst_110 {dimension_numbers = #tpu.dot_dimension_numbers<[1], [0], [0], [1], [0, 0, 1, 1], [], []>} : vector<8x8xbf16>, vector<8x256xbf16>, vector<8x256xf32> -> vector<8x256xf32>
    %134 = arith.addf %127, %133 : vector<8x256xf32>
    %c0_111 = arith.constant 0 : index
    %c144_112 = arith.constant 144 : index
    %135 = vector.load %arg10[%c0_111, %c144_112] : memref<8x512xbf16, #tpu.memory_space<vmem>>, vector<8x256xbf16>
    %c7_113 = arith.constant 7 : index
    %c0_114 = arith.constant 0 : index
    %c0_115 = arith.constant 0 : index
    %136 = vector.load %arg4[%c7_113, %c0_114, %c0_115] : memref<9x8x8xbf16, #tpu.memory_space<vmem>>, vector<1x8x8xbf16>
    %137 = vector.shape_cast %136 : vector<1x8x8xbf16> to vector<8x8xbf16>
    %cst_116 = arith.constant dense<0.000000e+00> : vector<8x256xf32>
    %138 = tpu.matmul %137, %135, %cst_116 {dimension_numbers = #tpu.dot_dimension_numbers<[1], [0], [0], [1], [0, 0, 1, 1], [], []>} : vector<8x8xbf16>, vector<8x256xbf16>, vector<8x256xf32> -> vector<8x256xf32>
    %139 = arith.addf %134, %138 : vector<8x256xf32>
    %c0_117 = arith.constant 0 : index
    %c145_118 = arith.constant 145 : index
    %140 = vector.load %arg10[%c0_117, %c145_118] : memref<8x512xbf16, #tpu.memory_space<vmem>>, vector<8x256xbf16>
    %141 = vector.broadcast %1 : vector<1x256xbf16> to vector<8x256xbf16>
    %142 = arith.mulf %140, %141 : vector<8x256xbf16>
    %c8_119 = arith.constant 8 : index
    %c0_120 = arith.constant 0 : index
    %c0_121 = arith.constant 0 : index
    %143 = vector.load %arg4[%c8_119, %c0_120, %c0_121] : memref<9x8x8xbf16, #tpu.memory_space<vmem>>, vector<1x8x8xbf16>
    %144 = vector.shape_cast %143 : vector<1x8x8xbf16> to vector<8x8xbf16>
    %cst_122 = arith.constant dense<0.000000e+00> : vector<8x256xf32>
    %145 = tpu.matmul %144, %142, %cst_122 {dimension_numbers = #tpu.dot_dimension_numbers<[1], [0], [0], [1], [0, 0, 1, 1], [], []>} : vector<8x8xbf16>, vector<8x256xbf16>, vector<8x256xf32> -> vector<8x256xf32>
    %146 = arith.addf %139, %145 : vector<8x256xf32>
    %cst_123 = arith.constant 0.000000e+00 : f32
    %147 = vector.broadcast %cst_123 : f32 to vector<8x256xf32>
    %148 = arith.maximumf %146, %147 : vector<8x256xf32>
    %149 = arith.truncf %148 : vector<8x256xf32> to vector<8x256xbf16>
    %c0_124 = arith.constant 0 : index
    %c0_125 = arith.constant 0 : index
    %c0_126 = arith.constant 0 : index
    %150 = vector.load %arg9[%c0_124, %c0_125, %c0_126] : memref<1x8x256xbf16, #tpu.memory_space<vmem>>, vector<1x8x256xbf16>
    %151 = vector.shape_cast %150 : vector<1x8x256xbf16> to vector<8x256xbf16>
    %152 = vector.shape_cast %149 : vector<8x256xbf16> to vector<1x8x256xbf16>
    tpu.vector_store %arg9[%c0_124, %c0_125, %c0_126], %152 {strides = array<i32>} : memref<1x8x256xbf16, #tpu.memory_space<vmem>>, vector<1x8x256xbf16>,
    return
  }
  func.func @transform_0(%arg0: i32) -> (i32, i32, i32) {
    %c0_i32 = arith.constant 0 : i32
    %c0_i32_0 = arith.constant 0 : i32
    %c0_i32_1 = arith.constant 0 : i32
    return %arg0, %c0_i32, %c0_i32_0 : i32, i32, i32
  }
  func.func @transform_1(%arg0: i32) -> (i32, i32, i32) {
    %c0_i32 = arith.constant 0 : i32
    %c0_i32_0 = arith.constant 0 : i32
    %c0_i32_1 = arith.constant 0 : i32
    %c0_i32_2 = arith.constant 0 : i32
    return %c0_i32, %c0_i32_0, %c0_i32_1 : i32, i32, i32
  }
  func.func @transform_2(%arg0: i32) -> (i32, i32) {
    %c0_i32 = arith.constant 0 : i32
    %c0_i32_0 = arith.constant 0 : i32
    %c0_i32_1 = arith.constant 0 : i32
    return %c0_i32, %c0_i32_0 : i32, i32
  }
  func.func @transform_3(%arg0: i32) -> (i32, i32, i32) {
    %c0_i32 = arith.constant 0 : i32
    %c0_i32_0 = arith.constant 0 : i32
    %c0_i32_1 = arith.constant 0 : i32
    %c0_i32_2 = arith.constant 0 : i32
    return %c0_i32, %c0_i32_0, %c0_i32_1 : i32, i32, i32
  }
  func.func @transform_4(%arg0: i32) -> (i32, i32) {
    %c0_i32 = arith.constant 0 : i32
    %c0_i32_0 = arith.constant 0 : i32
    %c0_i32_1 = arith.constant 0 : i32
    return %c0_i32, %c0_i32_0 : i32, i32
  }
  func.func @transform_5(%arg0: i32) -> (i32, i32) {
    %c0_i32 = arith.constant 0 : i32
    %c0_i32_0 = arith.constant 0 : i32
    %c0_i32_1 = arith.constant 0 : i32
    return %c0_i32, %c0_i32_0 : i32, i32
  }
  func.func @transform_6(%arg0: i32) -> (i32, i32) {
    %c0_i32 = arith.constant 0 : i32
    %c0_i32_0 = arith.constant 0 : i32
    %c0_i32_1 = arith.constant 0 : i32
    return %c0_i32, %c0_i32_0 : i32, i32
  }
  func.func @transform_7(%arg0: i32) -> (i32, i32) {
    %c0_i32 = arith.constant 0 : i32
    %c0_i32_0 = arith.constant 0 : i32
    %c0_i32_1 = arith.constant 0 : i32
    return %c0_i32, %c0_i32_0 : i32, i32
  }
  func.func @transform_8(%arg0: i32) -> (i32, i32, i32) {
    %c0_i32 = arith.constant 0 : i32
    %c0_i32_0 = arith.constant 0 : i32
    %c0_i32_1 = arith.constant 0 : i32
    return %arg0, %c0_i32, %c0_i32_0 : i32, i32, i32
  }
}

</mosaic_0001>

<llo_original>
// kernel: tpu_custom_call.1
$region0: #{tpu_custom_call.1}
  #allocation0 [shape = 'u32[]', space=smem, size = 0x4, offset = 0x4, fixed_abs, tag = 'smem constant byte address 0x4 - core index']
  #allocation1 [shape = 'u32[144,128]{1,0:T(1,128)}', space=vmem, size = 0x12000, scoped, tag = 'internal scratch']
  #allocation2 [shape = 'bf16[8,512]{1,0:T(8,128)(2,1)}', space=vmem, size = 0x2000, scoped, tag = 'scratch operand']
  %s0 = inlined_call_operand.vmem [shape: bf16[2,4,512], index: 0, kind: input, shape index: {}]
  %s1 = inlined_call_operand.vmem [shape: bf16[9,8,4], index: 1, kind: input, shape index: {}]
  %s2 = inlined_call_operand.vmem [shape: f32[8,1], index: 2, kind: input, shape index: {}]
  %s3 = inlined_call_operand.vmem [shape: bf16[9,8,8], index: 3, kind: input, shape index: {}]
  %s4 = inlined_call_operand.vmem [shape: f32[8,1], index: 4, kind: input, shape index: {}]
  %s5 = inlined_call_operand.vmem [shape: bf16[8,4], index: 5, kind: input, shape index: {}]
  %s6 = inlined_call_operand.vmem [shape: f32[8,1], index: 6, kind: input, shape index: {}]
  %s7 = inlined_call_operand.vmem [shape: bf16[3,256], index: 7, kind: input, shape index: {}]
  %s8 = inlined_call_operand.hbm [shape: bf16[2,8,256], index: 8, kind: output, shape index: {}]
  %s9 = sld [smem:[#allocation0]]
  $region65: #{tpu_custom_call.1} parent=0
    _
  %s11 = ssub.s32 1, %s9
  %s12 = scalar_select 0, %s11, %s9
  $region1: #{tpu_custom_call.1} parent=0
    #allocation3 [shape = 'u8[8192]{0}', space=vmem, size = 0x2000, scoped, tag = 'output window, operand 0']
    #allocation4 [shape = 's32[2]{0}', space=sflag, size = 0x8, scoped, tag = 'scoped memory for tpu_custom_call.1']
    %13 = vsyncpa [#allocation4], 0
    %s14 = scalar_lea.sflag [#allocation4], 1
    %15 = vsyncpa %s14, 0
    loop: start=0, step=1, limit=4
    $region2: #{tpu_custom_call.1} parent=1 // loop_pre_header
      _
    $region3: #{tpu_custom_call.1} parent=1 // loop_header
      %s17 = sphi 0, %s21
      %p18 = scmp.ge.s32.totalorder %s17, 4
      %s27 = sphi 0, %s29
      %s30 = sphi 0, %s27
      %s31 = sphi 0, %s30
      %s47 = sphi 0, %s31
      %s51 = sphi 0, %s51
      %s53 = sphi 0, %s51
      %s54 = sphi 0, %s53
      %s68 = sphi 0, %s54
      %s72 = sphi 0, %s72
      %s74 = sphi 0, %s72
      %s75 = sphi 0, %s74
      %s89 = sphi 0, %s75
      %s93 = sphi 0, %s93
      %s95 = sphi 0, %s93
      %s96 = sphi 0, %s95
      %s110 = sphi 0, %s96
      %s114 = sphi 0, %s114
      %s116 = sphi 0, %s114
      %s117 = sphi 0, %s116
      %s131 = sphi 0, %s117
      %s135 = sphi 0, %s135
      %s137 = sphi 0, %s135
      %s138 = sphi 0, %s137
      %s152 = sphi 0, %s138
      %s156 = sphi 0, %s156
      %s158 = sphi 0, %s156
      %s159 = sphi 0, %s158
      %s173 = sphi 0, %s159
      %s177 = sphi 0, %s177
      %s179 = sphi 0, %s177
      %s180 = sphi 0, %s179
      %s194 = sphi 0, %s180
      %s200 = sphi 0, %s202
      %s203 = sphi 0, %s200
      %s204 = sphi 0, %s203
      %s220 = sphi 0, %s204
    $region4: #{tpu_custom_call.1} parent=1 // loop_header_branch
      %20 = sbr.rel (%p18) target = $region8
    $region5: #{tpu_custom_call.1} parent=1 // loop_body
      %s22 = ssub.s32 %s17, 1
      %s23 = ssub.s32 %s17, 2
      %s24 = sadd.s32 %s17, 1
      %s25 = ssub.s32 %s17, %s24
      %p26 = scmp.eq.s32.totalorder %s25, 0
      %s28 = sadd.s32 %s27, 1
      %s29 = scalar_select %p26, %s27, %s28
      %p32 = pneg %p26
      %p33 = scmp.eq.s32.totalorder %s17, 1
      %p34 = por %p32, %p33
      %p35 = scmp.ne.s32.totalorder %s27, %s30
      %p36 = scmp.eq.s32.totalorder %s17, 0
      %p37 = por %p35, %p36
      %p38 = scmp.ne.s32.totalorder %s27, %s30
      %p39 = scmp.eq.s32.totalorder %s22, 1
      %p40 = por %p38, %p39
      %p41 = scmp.ne.s32.totalorder %s30, %s31
      %p42 = scmp.eq.s32.totalorder %s22, 0
      %p43 = por %p41, %p42
      %p44 = scmp.ne.s32.totalorder %s30, %s31
      %p45 = scmp.eq.s32.totalorder %s23, 1
      %p46 = por %p44, %p45
      %p48 = scmp.ne.s32.totalorder %s31, %s47
      %p49 = scmp.eq.s32.totalorder %s23, 0
      %p50 = por %p48, %p49
      %s52 = sadd.s32 %s51, 1
      %p55 = scmp.eq.s32.totalorder %s17, 1
      %p56 = scmp.ne.s32.totalorder %s51, %s53
      %p57 = scmp.eq.s32.totalorder %s17, 0
      %p58 = por %p56, %p57
      %p59 = scmp.ne.s32.totalorder %s51, %s53
      %p60 = scmp.eq.s32.totalorder %s22, 1
      %p61 = por %p59, %p60
      %p62 = scmp.ne.s32.totalorder %s53, %s54
      %p63 = scmp.eq.s32.totalorder %s22, 0
      %p64 = por %p62, %p63
      %p65 = scmp.ne.s32.totalorder %s53, %s54
      %p66 = scmp.eq.s32.totalorder %s23, 1
      %p67 = por %p65, %p66
      %p69 = scmp.ne.s32.totalorder %s54, %s68
      %p70 = scmp.eq.s32.totalorder %s23, 0
      %p71 = por %p69, %p70
      %s73 = sadd.s32 %s72, 1
      %p76 = scmp.eq.s32.totalorder %s17, 1
      %p77 = scmp.ne.s32.totalorder %s72, %s74
      %p78 = scmp.eq.s32.totalorder %s17, 0
      %p79 = por %p77, %p78
      %p80 = scmp.ne.s32.totalorder %s72, %s74
      %p81 = scmp.eq.s32.totalorder %s22, 1
      %p82 = por %p80, %p81
      %p83 = scmp.ne.s32.totalorder %s74, %s75
      %p84 = scmp.eq.s32.totalorder %s22, 0
      %p85 = por %p83, %p84
      %p86 = scmp.ne.s32.totalorder %s74, %s75
      %p87 = scmp.eq.s32.totalorder %s23, 1
      %p88 = por %p86, %p87
      %p90 = scmp.ne.s32.totalorder %s75, %s89
      %p91 = scmp.eq.s32.totalorder %s23, 0
      %p92 = por %p90, %p91
      %s94 = sadd.s32 %s93, 1
      %p97 = scmp.eq.s32.totalorder %s17, 1
      %p98 = scmp.ne.s32.totalorder %s93, %s95
      %p99 = scmp.eq.s32.totalorder %s17, 0
      %p100 = por %p98, %p99
      %p101 = scmp.ne.s32.totalorder %s93, %s95
      %p102 = scmp.eq.s32.totalorder %s22, 1
      %p103 = por %p101, %p102
      %p104 = scmp.ne.s32.totalorder %s95, %s96
      %p105 = scmp.eq.s32.totalorder %s22, 0
      %p106 = por %p104, %p105
      %p107 = scmp.ne.s32.totalorder %s95, %s96
      %p108 = scmp.eq.s32.totalorder %s23, 1
      %p109 = por %p107, %p108
      %p111 = scmp.ne.s32.totalorder %s96, %s110
      %p112 = scmp.eq.s32.totalorder %s23, 0
      %p113 = por %p111, %p112
      %s115 = sadd.s32 %s114, 1
      %p118 = scmp.eq.s32.totalorder %s17, 1
      %p119 = scmp.ne.s32.totalorder %s114, %s116
      %p120 = scmp.eq.s32.totalorder %s17, 0
      %p121 = por %p119, %p120
      %p122 = scmp.ne.s32.totalorder %s114, %s116
      %p123 = scmp.eq.s32.totalorder %s22, 1
      %p124 = por %p122, %p123
      %p125 = scmp.ne.s32.totalorder %s116, %s117
      %p126 = scmp.eq.s32.totalorder %s22, 0
      %p127 = por %p125, %p126
      %p128 = scmp.ne.s32.totalorder %s116, %s117
      %p129 = scmp.eq.s32.totalorder %s23, 1
      %p130 = por %p128, %p129
      %p132 = scmp.ne.s32.totalorder %s117, %s131
      %p133 = scmp.eq.s32.totalorder %s23, 0
      %p134 = por %p132, %p133
      %s136 = sadd.s32 %s135, 1
      %p139 = scmp.eq.s32.totalorder %s17, 1
      %p140 = scmp.ne.s32.totalorder %s135, %s137
      %p141 = scmp.eq.s32.totalorder %s17, 0
      %p142 = por %p140, %p141
      %p143 = scmp.ne.s32.totalorder %s135, %s137
      %p144 = scmp.eq.s32.totalorder %s22, 1
      %p145 = por %p143, %p144
      %p146 = scmp.ne.s32.totalorder %s137, %s138
      %p147 = scmp.eq.s32.totalorder %s22, 0
      %p148 = por %p146, %p147
      %p149 = scmp.ne.s32.totalorder %s137, %s138
      %p150 = scmp.eq.s32.totalorder %s23, 1
      %p151 = por %p149, %p150
      %p153 = scmp.ne.s32.totalorder %s138, %s152
      %p154 = scmp.eq.s32.totalorder %s23, 0
      %p155 = por %p153, %p154
      %s157 = sadd.s32 %s156, 1
      %p160 = scmp.eq.s32.totalorder %s17, 1
      %p161 = scmp.ne.s32.totalorder %s156, %s158
      %p162 = scmp.eq.s32.totalorder %s17, 0
      %p163 = por %p161, %p162
      %p164 = scmp.ne.s32.totalorder %s156, %s158
      %p165 = scmp.eq.s32.totalorder %s22, 1
      %p166 = por %p164, %p165
      %p167 = scmp.ne.s32.totalorder %s158, %s159
      %p168 = scmp.eq.s32.totalorder %s22, 0
      %p169 = por %p167, %p168
      %p170 = scmp.ne.s32.totalorder %s158, %s159
      %p171 = scmp.eq.s32.totalorder %s23, 1
      %p172 = por %p170, %p171
      %p174 = scmp.ne.s32.totalorder %s159, %s173
      %p175 = scmp.eq.s32.totalorder %s23, 0
      %p176 = por %p174, %p175
      %s178 = sadd.s32 %s177, 1
      %p181 = scmp.eq.s32.totalorder %s17, 1
      %p182 = scmp.ne.s32.totalorder %s177, %s179
      %p183 = scmp.eq.s32.totalorder %s17, 0
      %p184 = por %p182, %p183
      %p185 = scmp.ne.s32.totalorder %s177, %s179
      %p186 = scmp.eq.s32.totalorder %s22, 1
      %p187 = por %p185, %p186
      %p188 = scmp.ne.s32.totalorder %s179, %s180
      %p189 = scmp.eq.s32.totalorder %s22, 0
      %p190 = por %p188, %p189
      %p191 = scmp.ne.s32.totalorder %s179, %s180
      %p192 = scmp.eq.s32.totalorder %s23, 1
      %p193 = por %p191, %p192
      %p195 = scmp.ne.s32.totalorder %s180, %s194
      %p196 = scmp.eq.s32.totalorder %s23, 0
      %p197 = por %p195, %p196
      %s198 = ssub.s32 %s17, %s24
      %p199 = scmp.eq.s32.totalorder %s198, 0
      %s201 = sadd.s32 %s200, 1
      %s202 = scalar_select %p199, %s200, %s201
      %p205 = pneg %p199
      %p206 = scmp.eq.s32.totalorder %s17, 1
      %p207 = por %p205, %p206
      %p208 = scmp.ne.s32.totalorder %s200, %s203
      %p209 = scmp.eq.s32.totalorder %s17, 0
      %p210 = por %p208, %p209
      %p211 = scmp.ne.s32.totalorder %s200, %s203
      %p212 = scmp.eq.s32.totalorder %s22, 1
      %p213 = por %p211, %p212
      %p214 = scmp.ne.s32.totalorder %s203, %s204
      %p215 = scmp.eq.s32.totalorder %s22, 0
      %p216 = por %p214, %p215
      %p217 = scmp.ne.s32.totalorder %s203, %s204
      %p218 = scmp.eq.s32.totalorder %s23, 1
      %p219 = por %p217, %p218
      %p221 = scmp.ne.s32.totalorder %s204, %s220
      %p222 = scmp.eq.s32.totalorder %s23, 0
      %p223 = por %p221, %p222
      %p224 = scmp.le.s32.totalorder 1, %s17
      %p225 = scmp.lt.s32.totalorder %s17, 3
      %p226 = pnand %p224, %p225
      %p227 = pneg %p226
      // Predicated region
      $region9: #{tpu_custom_call.1} parent=5 // pred_check
        _
      $region10: #{tpu_custom_call.1} parent=5 // pred_check_branch
        %229 = sbr.rel (%p226) target = $region12
      $region11: #{tpu_custom_call.1} parent=5 // pred_region
        %s230 = ssub.s32 %s17, 1
        // Predicated region
        $region13: #{tpu_custom_call.1} parent=11 // pred_check
          %p231 = pneg %p64
        $region14: #{tpu_custom_call.1} parent=11 // pred_check_branch
          %233 = sbr.rel (%p231) target = $region16
        $region15: #{tpu_custom_call.1} parent=11 // pred_region
          _
        $region16: #{tpu_custom_call.1} parent=11 // pred_fallthru
          _
        // Predicated region
        $region17: #{tpu_custom_call.1} parent=11 // pred_check
          %p234 = pneg %p85
        $region18: #{tpu_custom_call.1} parent=11 // pred_check_branch
          %236 = sbr.rel (%p234) target = $region20
        $region19: #{tpu_custom_call.1} parent=11 // pred_region
          _
        $region20: #{tpu_custom_call.1} parent=11 // pred_fallthru
          _
        // Predicated region
        $region21: #{tpu_custom_call.1} parent=11 // pred_check
          %p237 = pneg %p106
        $region22: #{tpu_custom_call.1} parent=11 // pred_check_branch
          %239 = sbr.rel (%p237) target = $region24
        $region23: #{tpu_custom_call.1} parent=11 // pred_region
          _
        $region24: #{tpu_custom_call.1} parent=11 // pred_fallthru
          _
        // Predicated region
        $region25: #{tpu_custom_call.1} parent=11 // pred_check
          %p240 = pneg %p127
        $region26: #{tpu_custom_call.1} parent=11 // pred_check_branch
          %242 = sbr.rel (%p240) target = $region28
        $region27: #{tpu_custom_call.1} parent=11 // pred_region
          _
        $region28: #{tpu_custom_call.1} parent=11 // pred_fallthru
          _
        // Predicated region
        $region29: #{tpu_custom_call.1} parent=11 // pred_check
          %p243 = pneg %p148
        $region30: #{tpu_custom_call.1} parent=11 // pred_check_branch
          %245 = sbr.rel (%p243) target = $region32
        $region31: #{tpu_custom_call.1} parent=11 // pred_region
          _
        $region32: #{tpu_custom_call.1} parent=11 // pred_fallthru
          _
        // Predicated region
        $region33: #{tpu_custom_call.1} parent=11 // pred_check
          %p246 = pneg %p169
        $region34: #{tpu_custom_call.1} parent=11 // pred_check_branch
          %248 = sbr.rel (%p246) target = $region36
        $region35: #{tpu_custom_call.1} parent=11 // pred_region
          _
        $region36: #{tpu_custom_call.1} parent=11 // pred_fallthru
          _
        // Predicated region
        $region37: #{tpu_custom_call.1} parent=11 // pred_check
          %p249 = pneg %p190
        $region38: #{tpu_custom_call.1} parent=11 // pred_check_branch
          %251 = sbr.rel (%p249) target = $region40
        $region39: #{tpu_custom_call.1} parent=11 // pred_region
          _
        $region40: #{tpu_custom_call.1} parent=11 // pred_fallthru
          _
      $region12: #{tpu_custom_call.1} parent=5 // pred_fallthru
        _
      %p252 = scmp.lt.s32.totalorder %s17, 2
      // Predicated region
      $region41: #{tpu_custom_call.1} parent=5 // pred_check
        %p253 = pneg %p252
      $region42: #{tpu_custom_call.1} parent=5 // pred_check_branch
        %255 = sbr.rel (%p253) target = $region44
      $region43: #{tpu_custom_call.1} parent=5 // pred_region
        // Predicated region
        $region45: #{tpu_custom_call.1} parent=43 // pred_check
          %p256 = pneg %p37
        $region46: #{tpu_custom_call.1} parent=43 // pred_check_branch
          %258 = sbr.rel (%p256) target = $region48
        $region47: #{tpu_custom_call.1} parent=43 // pred_region
          %p259 = scmp.lt.s32.totalorder %s17, 1
          %s260 = scalar_select %p259, %s17, 1
          %s261 = smul.addr %s260, 4
          %s262 = smul.addr %s261, 2
          %s263 = scalar_lea.vmem %s0, %s262
        $region48: #{tpu_custom_call.1} parent=43 // pred_fallthru
          _
      $region44: #{tpu_custom_call.1} parent=5 // pred_fallthru
        _
      %p264 = scmp.le.s32.totalorder 1, %s17
      %p265 = scmp.lt.s32.totalorder %s17, 3
      %p266 = pnand %p264, %p265
      %p267 = pneg %p266
      // Predicated region
      $region49: #{tpu_custom_call.1} parent=5 // pred_check
        _
      $region50: #{tpu_custom_call.1} parent=5 // pred_check_branch
        %269 = sbr.rel (%p266) target = $region52
      $region51: #{tpu_custom_call.1} parent=5 // pred_region
        %s270 = ssub.s32 %s17, 1
        %p271 = scmp.lt.s32.totalorder %s22, 1
        %s272 = scalar_select %p271, %s22, 1
        %s273 = smul.addr %s272, 4
        %s274 = smul.addr %s273, 2
        %s275 = scalar_lea.vmem %s0, %s274
        %p276 = pneg %p43
        %p277 = pneg %p40
        %p278 = pneg %p64
        %p279 = pneg %p61
        %p280 = pneg %p85
        %p281 = pneg %p82
        %p282 = pneg %p106
        %p283 = pneg %p103
        %p284 = pneg %p127
        %p285 = pneg %p124
        %p286 = pneg %p148
        %p287 = pneg %p145
        %p288 = pneg %p169
        %p289 = pneg %p166
        %p290 = pneg %p190
        %p291 = pneg %p187
        %p292 = pneg %p216
        %p293 = pneg %p213
        %s294 = sand.u32 %s203, 1
        %s295 = scalar_lea.sflag [#allocation4], %s294
        %s296 = sand.u32 %s203, 1
        %s297 = smul.addr %s296, 8
        %s298 = scalar_lea.vmem [#allocation3], %s297
        %p299 = scmp.lt.s32.totalorder %s22, 1
        %s300 = scalar_select %p299, %s22, 1
        %s301 = smul.addr %s300, 4
        %s302 = smul.addr %s301, 2
        %s303 = scalar_lea.vmem %s0, %s302
        %v305 = vld [vmem:[%s7] sm:$0x5]
        %v306 = vld [vmem:[%s7] sm:$0xa]
        %v307 = vld [vmem:[%s303] sm:$0x3f]
        %v310 = vunpack.c.l.s4 1983009808
        %v311 = vunpack.c.0.s8 %v310
        %v312 = vlaneseq
        %v313 = vshrl.u32 %v312, 7
        %v314 = vsub.s32 %v311, %v313
        %v315 = vrot.slane %v305, %v314
        %v316 = vcombine.high %v315, %v315
        %v318 = vpack.i.b16 %v315, %v315
        %v320 = vlaneseq
        %v321 = vshrl.u32 %v320, 7
        %v322 = vsub.s32 0, %v321
        %v323 = vrot.slane %v318, %v322
        %v325 = vpack.i.b16 %v316, %v316
        %v327 = vlaneseq
        %v328 = vshrl.u32 %v327, 7
        %v329 = vsub.s32 0, %v328
        %v330 = vrot.slane %v325, %v329
        %v333 = vcombine.low %v323, %v330
        %v335 = vunpack.c.l.s4 1983009808
        %v336 = vunpack.c.0.s8 %v335
        %v337 = vlaneseq
        %v338 = vshrl.u32 %v337, 7
        %v339 = vsub.s32 %v336, %v338
        %v340 = vrot.slane %v333, %v339
        %341 = vrot.lane.b32.xlu0 %v340, 111
        %v342 = vpop.permute.xlu0 %341
        %v343 = vrot.slane %v342, 6
        %vm344 = vcmask 908288
        %v345 = vsel %vm344, %v343, %v342
        %v347 = vmul.bf16 %v307, %v345
        %v348 = vld [vmem:[%s1] sm:$0xf]
        %s349 = scalar_lea.vmem %s1, 4
        %v350 = vld [vmem:[%s349] sm:$0xf]
        %v352 = vcombine.high %v307, %v307
        %v354 = vunpack.c.l.s4 1983009808
        %v355 = vunpack.c.0.s8 %v354
        %v356 = vlaneseq
        %v357 = vshrl.u32 %v356, 7
        %v358 = vsub.s32 %v355, %v357
        %v359 = vrot.slane %v307, %v358
        %v361 = vunpack.c.l.s4 1983009808
        %v362 = vunpack.c.0.s8 %v361
        %v363 = vlaneseq
        %v364 = vshrl.u32 %v363, 7
        %v365 = vsub.s32 %v362, %v364
        %v366 = vrot.slane %v352, %v365
        %v367 = vcombine.high %v359, %v359
        %368 = vrot.lane.b32.xlu0 %v359, 16
        %v369 = vpop.permute.xlu0 %368
        %370 = vrot.lane.b32.xlu0 %v367, 16
        %v371 = vpop.permute.xlu0 %370
        %372 = vrot.lane.b32.xlu0 %v366, 16
        %v373 = vpop.permute.xlu0 %372
        %vm374 = vcmask 130048
        %v375 = vsel %vm374, %v369, %v371
        %v376 = vsel %vm374, %v371, %v373
        %vm377 = vcmask 31744
        %v379 = vsel %vm377, %v350, 0
        %vm381 = vcmask 1041408
        %v383 = vsel %vm381, %v375, 0
        %v386 = vsel %vm381, %v376, 0
        %388 = vmatprep.subr.bf16.mxu0 %v386
        %389 = vmatpush1.bf16.msra.mxu0 %v383
        %390 = vmatprep.subr.bf16.mxu0 0
        %391 = vmatpush1.bf16.msra.mxu0 0
        %392 = vmatprep.subr.bf16.mxu0 0
        %393 = vmatpush1.bf16.msra.mxu0 0
        %394 = vmatprep.subr.bf16.mxu0 0
        %395 = vmatpush1.bf16.msra.mxu0 0
        %396 = vmatprep.subr.bf16.mxu0 0
        %397 = vmatpush1.bf16.msra.mxu0 0
        %398 = vmatprep.subr.bf16.mxu0 0
        %399 = vmatpush1.bf16.msra.mxu0 0
        %400 = vmatprep.subr.bf16.mxu0 0
        %401 = vmatpush1.bf16.msra.mxu0 0
        %402 = vmatprep.subr.bf16.mxu0 0
        %403 = vmatpush1.bf16.msra.mxu0 0
        %404 = vmatprep.subr.bf16.mxu0 0
        %405 = vmatpush1.bf16.msra.mxu0 0
        %406 = vmatprep.subr.bf16.mxu0 0
        %407 = vmatpush1.bf16.msra.mxu0 0
        %408 = vmatprep.subr.bf16.mxu0 0
        %409 = vmatpush1.bf16.msra.mxu0 0
        %410 = vmatprep.subr.bf16.mxu0 0
        %411 = vmatpush1.bf16.msra.mxu0 0
        %412 = vmatprep.subr.bf16.mxu0 0
        %413 = vmatpush1.bf16.msra.mxu0 0
        %414 = vmatprep.subr.bf16.mxu0 0
        %415 = vmatpush1.bf16.msra.mxu0 0
        %416 = vmatprep.subr.bf16.mxu0 0
        %417 = vmatpush1.bf16.msra.mxu0 0
        %418 = vmatprep.subr.bf16.mxu0 0
        %419 = vmatpush1.bf16.msra.mxu0 0
        %420 = vmatprep.mubr.bf16.mxu0 0
        %421 = vmatmul.mubr.bf16.gmra.mrb[0].mxu0 %v379
        %v422 = vpop.f32.mrb[0].mxu0
        %v423 = vadd.f32 0.0, %v422
        %v424 = vpop.f32.mrb[0].mxu0
        %v425 = vadd.f32 0.0, %v424
        %v426 = vpop.f32.mrb[0].mxu0
        %v427 = vpop.f32.mrb[0].mxu0
        %428 = vdwg.mxu0
        %v430 = vcombine.high %v347, %v347
        %v432 = vunpack.c.l.s4 1983009808
        %v433 = vunpack.c.0.s8 %v432
        %v434 = vlaneseq
        %v435 = vshrl.u32 %v434, 7
        %v436 = vsub.s32 %v433, %v435
        %v437 = vrot.slane %v347, %v436
        %v439 = vunpack.c.l.s4 1983009808
        %v440 = vunpack.c.0.s8 %v439
        %v441 = vlaneseq
        %v442 = vshrl.u32 %v441, 7
        %v443 = vsub.s32 %v440, %v442
        %v444 = vrot.slane %v430, %v443
        %v445 = vcombine.high %v437, %v437
        %446 = vrot.lane.b32.xlu0 %v437, 17
        %v447 = vpop.permute.xlu0 %446
        %448 = vrot.lane.b32.xlu0 %v445, 17
        %v449 = vpop.permute.xlu0 %448
        %450 = vrot.lane.b32.xlu0 %v444, 17
        %v451 = vpop.permute.xlu0 %450
        %vm452 = vcmask 138240
        %v453 = vsel %vm452, %v447, %v449
        %v454 = vsel %vm452, %v449, %v451
        %v456 = vsel %vm377, %v348, 0
        %v459 = vsel %vm381, %v453, 0
        %v462 = vsel %vm381, %v454, 0
        %464 = vmatprep.subr.bf16.mxu0 %v462
        %465 = vmatpush1.bf16.msra.mxu0 %v459
        %466 = vmatprep.subr.bf16.mxu0 0
        %467 = vmatpush1.bf16.msra.mxu0 0
        %468 = vmatprep.subr.bf16.mxu0 0
        %469 = vmatpush1.bf16.msra.mxu0 0
        %470 = vmatprep.subr.bf16.mxu0 0
        %471 = vmatpush1.bf16.msra.mxu0 0
        %472 = vmatprep.subr.bf16.mxu0 0
        %473 = vmatpush1.bf16.msra.mxu0 0
        %474 = vmatprep.subr.bf16.mxu0 0
        %475 = vmatpush1.bf16.msra.mxu0 0
        %476 = vmatprep.subr.bf16.mxu0 0
        %477 = vmatpush1.bf16.msra.mxu0 0
        %478 = vmatprep.subr.bf16.mxu0 0
        %479 = vmatpush1.bf16.msra.mxu0 0
        %480 = vmatprep.subr.bf16.mxu0 0
        %481 = vmatpush1.bf16.msra.mxu0 0
        %482 = vmatprep.subr.bf16.mxu0 0
        %483 = vmatpush1.bf16.msra.mxu0 0
        %484 = vmatprep.subr.bf16.mxu0 0
        %485 = vmatpush1.bf16.msra.mxu0 0
        %486 = vmatprep.subr.bf16.mxu0 0
        %487 = vmatpush1.bf16.msra.mxu0 0
        %488 = vmatprep.subr.bf16.mxu0 0
        %489 = vmatpush1.bf16.msra.mxu0 0
        %490 = vmatprep.subr.bf16.mxu0 0
        %491 = vmatpush1.bf16.msra.mxu0 0
        %492 = vmatprep.subr.bf16.mxu0 0
        %493 = vmatpush1.bf16.msra.mxu0 0
        %494 = vmatprep.subr.bf16.mxu0 0
        %495 = vmatpush1.bf16.msra.mxu0 0
        %496 = vmatprep.mubr.bf16.mxu0 0
        %497 = vmatmul.mubr.bf16.gmra.mrb[0].mxu0 %v456
        %v498 = vpop.f32.mrb[0].mxu0
        %v499 = vadd.f32 %v423, %v498
        %v500 = vpop.f32.mrb[0].mxu0
        %v501 = vadd.f32 %v425, %v500
        %v502 = vpop.f32.mrb[0].mxu0
        %v503 = vpop.f32.mrb[0].mxu0
        %504 = vdwg.mxu0
        %v505 = vld [vmem:[%s303] sm:$0x3f]
        %v508 = vunpack.c.l.s4 1983009808
        %v509 = vunpack.c.0.s8 %v508
        %v510 = vlaneseq
        %v511 = vshrl.u32 %v510, 7
        %v512 = vsub.s32 %v509, %v511
        %v513 = vrot.slane %v306, %v512
        %v514 = vcombine.high %v513, %v513
        %v516 = vpack.i.b16 %v513, %v513
        %v518 = vlaneseq
        %v519 = vshrl.u32 %v518, 7
        %v520 = vsub.s32 1, %v519
        %v521 = vrot.slane %v516, %v520
        %v523 = vpack.i.b16 %v514, %v514
        %v525 = vlaneseq
        %v526 = vshrl.u32 %v525, 7
        %v527 = vsub.s32 1, %v526
        %v528 = vrot.slane %v523, %v527
        %v531 = vcombine.low %v521, %v528
        %v533 = vunpack.c.l.s4 1983009808
        %v534 = vunpack.c.0.s8 %v533
        %v535 = vlaneseq
        %v536 = vshrl.u32 %v535, 7
        %v537 = vsub.s32 %v534, %v536
        %v538 = vrot.slane %v531, %v537
        %539 = vrot.lane.b32.xlu0 %v538, 113
        %v540 = vpop.permute.xlu0 %539
        %v541 = vrot.slane %v540, 6
        %vm542 = vcmask 924672
        %v543 = vsel %vm542, %v541, %v540
        %v545 = vmul.bf16 %v505, %v543
        %s546 = scalar_lea.vmem %s1, 8
        %v547 = vld [vmem:[%s546] sm:$0xf]
        %v549 = vcombine.high %v545, %v545
        %v551 = vunpack.c.l.s4 1983009808
        %v552 = vunpack.c.0.s8 %v551
        %v553 = vlaneseq
        %v554 = vshrl.u32 %v553, 7
        %v555 = vsub.s32 %v552, %v554
        %v556 = vrot.slane %v545, %v555
        %v558 = vunpack.c.l.s4 1983009808
        %v559 = vunpack.c.0.s8 %v558
        %v560 = vlaneseq
        %v561 = vshrl.u32 %v560, 7
        %v562 = vsub.s32 %v559, %v561
        %v563 = vrot.slane %v549, %v562
        %v564 = vcombine.high %v556, %v556
        %565 = vrot.lane.b32.xlu0 %v556, 15
        %v566 = vpop.permute.xlu0 %565
        %567 = vrot.lane.b32.xlu0 %v564, 15
        %v568 = vpop.permute.xlu0 %567
        %569 = vrot.lane.b32.xlu0 %v563, 15
        %v570 = vpop.permute.xlu0 %569
        %vm571 = vcmask 121856
        %v572 = vsel %vm571, %v566, %v568
        %v573 = vsel %vm571, %v568, %v570
        %v575 = vsel %vm377, %v547, 0
        %v578 = vsel %vm381, %v572, 0
        %v581 = vsel %vm381, %v573, 0
        %583 = vmatprep.subr.bf16.mxu0 %v581
        %584 = vmatpush1.bf16.msra.mxu0 %v578
        %585 = vmatprep.subr.bf16.mxu0 0
        %586 = vmatpush1.bf16.msra.mxu0 0
        %587 = vmatprep.subr.bf16.mxu0 0
        %588 = vmatpush1.bf16.msra.mxu0 0
        %589 = vmatprep.subr.bf16.mxu0 0
        %590 = vmatpush1.bf16.msra.mxu0 0
        %591 = vmatprep.subr.bf16.mxu0 0
        %592 = vmatpush1.bf16.msra.mxu0 0
        %593 = vmatprep.subr.bf16.mxu0 0
        %594 = vmatpush1.bf16.msra.mxu0 0
        %595 = vmatprep.subr.bf16.mxu0 0
        %596 = vmatpush1.bf16.msra.mxu0 0
        %597 = vmatprep.subr.bf16.mxu0 0
        %598 = vmatpush1.bf16.msra.mxu0 0
        %599 = vmatprep.subr.bf16.mxu0 0
        %600 = vmatpush1.bf16.msra.mxu0 0
        %601 = vmatprep.subr.bf16.mxu0 0
        %602 = vmatpush1.bf16.msra.mxu0 0
        %603 = vmatprep.subr.bf16.mxu0 0
        %604 = vmatpush1.bf16.msra.mxu0 0
        %605 = vmatprep.subr.bf16.mxu0 0
        %606 = vmatpush1.bf16.msra.mxu0 0
        %607 = vmatprep.subr.bf16.mxu0 0
        %608 = vmatpush1.bf16.msra.mxu0 0
        %609 = vmatprep.subr.bf16.mxu0 0
        %610 = vmatpush1.bf16.msra.mxu0 0
        %611 = vmatprep.subr.bf16.mxu0 0
        %612 = vmatpush1.bf16.msra.mxu0 0
        %613 = vmatprep.subr.bf16.mxu0 0
        %614 = vmatpush1.bf16.msra.mxu0 0
        %615 = vmatprep.mubr.bf16.mxu0 0
        %616 = vmatmul.mubr.bf16.gmra.mrb[0].mxu0 %v575
        %v617 = vpop.f32.mrb[0].mxu0
        %v618 = vadd.f32 0.0, %v617
        %v619 = vpop.f32.mrb[0].mxu0
        %v620 = vadd.f32 0.0, %v619
        %v621 = vpop.f32.mrb[0].mxu0
        %v622 = vpop.f32.mrb[0].mxu0
        %623 = vdwg.mxu0
        %v624 = vadd.f32 %v499, %v618
        %v625 = vadd.f32 %v501, %v620
        %v626 = vld [vmem:[%s303] sm:$0x3f]
        %627 = vrot.lane.b32.xlu0 %v340, 127
        %v628 = vpop.permute.xlu0 %627
        %v629 = vrot.slane %v628, 6
        %vm630 = vcmask 1039360
        %v631 = vsel %vm630, %v629, %v628
        %v633 = vmul.bf16 %v626, %v631
        %s634 = scalar_lea.vmem %s1, 12
        %v635 = vld [vmem:[%s634] sm:$0xf]
        %v637 = vcombine.high %v633, %v633
        %v639 = vunpack.c.l.s4 1983009808
        %v640 = vunpack.c.0.s8 %v639
        %v641 = vlaneseq
        %v642 = vshrl.u32 %v641, 7
        %v643 = vsub.s32 %v640, %v642
        %v644 = vrot.slane %v633, %v643
        %v646 = vunpack.c.l.s4 1983009808
        %v647 = vunpack.c.0.s8 %v646
        %v648 = vlaneseq
        %v649 = vshrl.u32 %v648, 7
        %v650 = vsub.s32 %v647, %v649
        %v651 = vrot.slane %v637, %v650
        %v652 = vcombine.high %v644, %v644
        %653 = vrot.lane.b32.xlu0 %v644, 1
        %v654 = vpop.permute.xlu0 %653
        %655 = vrot.lane.b32.xlu0 %v652, 1
        %v656 = vpop.permute.xlu0 %655
        %657 = vrot.lane.b32.xlu0 %v651, 1
        %v658 = vpop.permute.xlu0 %657
        %vm659 = vcmask 7168
        %v660 = vsel %vm659, %v654, %v656
        %v661 = vsel %vm659, %v656, %v658
        %v663 = vsel %vm377, %v635, 0
        %v666 = vsel %vm381, %v660, 0
        %v669 = vsel %vm381, %v661, 0
        %671 = vmatprep.subr.bf16.mxu0 %v669
        %672 = vmatpush1.bf16.msra.mxu0 %v666
        %673 = vmatprep.subr.bf16.mxu0 0
        %674 = vmatpush1.bf16.msra.mxu0 0
        %675 = vmatprep.subr.bf16.mxu0 0
        %676 = vmatpush1.bf16.msra.mxu0 0
        %677 = vmatprep.subr.bf16.mxu0 0
        %678 = vmatpush1.bf16.msra.mxu0 0
        %679 = vmatprep.subr.bf16.mxu0 0
        %680 = vmatpush1.bf16.msra.mxu0 0
        %681 = vmatprep.subr.bf16.mxu0 0
        %682 = vmatpush1.bf16.msra.mxu0 0
        %683 = vmatprep.subr.bf16.mxu0 0
        %684 = vmatpush1.bf16.msra.mxu0 0
        %685 = vmatprep.subr.bf16.mxu0 0
        %686 = vmatpush1.bf16.msra.mxu0 0
        %687 = vmatprep.subr.bf16.mxu0 0
        %688 = vmatpush1.bf16.msra.mxu0 0
        %689 = vmatprep.subr.bf16.mxu0 0
        %690 = vmatpush1.bf16.msra.mxu0 0
        %691 = vmatprep.subr.bf16.mxu0 0
        %692 = vmatpush1.bf16.msra.mxu0 0
        %693 = vmatprep.subr.bf16.mxu0 0
        %694 = vmatpush1.bf16.msra.mxu0 0
        %695 = vmatprep.subr.bf16.mxu0 0
        %696 = vmatpush1.bf16.msra.mxu0 0
        %697 = vmatprep.subr.bf16.mxu0 0
        %698 = vmatpush1.bf16.msra.mxu0 0
        %699 = vmatprep.subr.bf16.mxu0 0
        %700 = vmatpush1.bf16.msra.mxu0 0
        %701 = vmatprep.subr.bf16.mxu0 0
        %702 = vmatpush1.bf16.msra.mxu0 0
        %703 = vmatprep.mubr.bf16.mxu0 0
        %704 = vmatmul.mubr.bf16.gmra.mrb[0].mxu0 %v663
        %v705 = vpop.f32.mrb[0].mxu0
        %v706 = vadd.f32 0.0, %v705
        %v707 = vpop.f32.mrb[0].mxu0
        %v708 = vadd.f32 0.0, %v707
        %v709 = vpop.f32.mrb[0].mxu0
        %v710 = vpop.f32.mrb[0].mxu0
        %711 = vdwg.mxu0
        %v712 = vadd.f32 %v624, %v706
        %v713 = vadd.f32 %v625, %v708
        %v714 = vld [vmem:[%s303 + $0x2] sm:$0xf]
        %s715 = scalar_lea.vmem %s1, 16
        %v716 = vld [vmem:[%s715] sm:$0xf]
        %v719 = vunpack.c.l.s4 1983009808
        %v720 = vunpack.c.0.s8 %v719
        %v721 = vlaneseq
        %v722 = vshrl.u32 %v721, 7
        %v723 = vsub.s32 %v720, %v722
        %v724 = vrot.slane %v714, %v723
        %v725 = vcombine.high %v724, %v724
        %v727 = vsel %vm377, %v716, 0
        %v730 = vsel %vm381, %v724, 0
        %v733 = vsel %vm381, %v725, 0
        %735 = vmatprep.subr.bf16.mxu0 %v733
        %736 = vmatpush1.bf16.msra.mxu0 %v730
        %737 = vmatprep.subr.bf16.mxu0 0
        %738 = vmatpush1.bf16.msra.mxu0 0
        %739 = vmatprep.subr.bf16.mxu0 0
        %740 = vmatpush1.bf16.msra.mxu0 0
        %741 = vmatprep.subr.bf16.mxu0 0
        %742 = vmatpush1.bf16.msra.mxu0 0
        %743 = vmatprep.subr.bf16.mxu0 0
        %744 = vmatpush1.bf16.msra.mxu0 0
        %745 = vmatprep.subr.bf16.mxu0 0
        %746 = vmatpush1.bf16.msra.mxu0 0
        %747 = vmatprep.subr.bf16.mxu0 0
        %748 = vmatpush1.bf16.msra.mxu0 0
        %749 = vmatprep.subr.bf16.mxu0 0
        %750 = vmatpush1.bf16.msra.mxu0 0
        %751 = vmatprep.subr.bf16.mxu0 0
        %752 = vmatpush1.bf16.msra.mxu0 0
        %753 = vmatprep.subr.bf16.mxu0 0
        %754 = vmatpush1.bf16.msra.mxu0 0
        %755 = vmatprep.subr.bf16.mxu0 0
        %756 = vmatpush1.bf16.msra.mxu0 0
        %757 = vmatprep.subr.bf16.mxu0 0
        %758 = vmatpush1.bf16.msra.mxu0 0
        %759 = vmatprep.subr.bf16.mxu0 0
        %760 = vmatpush1.bf16.msra.mxu0 0
        %761 = vmatprep.subr.bf16.mxu0 0
        %762 = vmatpush1.bf16.msra.mxu0 0
        %763 = vmatprep.subr.bf16.mxu0 0
        %764 = vmatpush1.bf16.msra.mxu0 0
        %765 = vmatprep.subr.bf16.mxu0 0
        %766 = vmatpush1.bf16.msra.mxu0 0
        %767 = vmatprep.mubr.bf16.mxu0 0
        %768 = vmatmul.mubr.bf16.gmra.mrb[0].mxu0 %v727
        %v769 = vpop.f32.mrb[0].mxu0
        %v770 = vadd.f32 0.0, %v769
        %v771 = vpop.f32.mrb[0].mxu0
        %v772 = vadd.f32 0.0, %v771
        %v773 = vpop.f32.mrb[0].mxu0
        %v774 = vpop.f32.mrb[0].mxu0
        %775 = vdwg.mxu0
        %v776 = vadd.f32 %v712, %v770
        %v777 = vadd.f32 %v713, %v772
        %v778 = vld [vmem:[%s303 + $0x2] sm:$0x3f]
        %779 = vrot.lane.b32.xlu0 %v538, 1
        %v780 = vpop.permute.xlu0 %779
        %v781 = vrot.slane %v780, 6
        %v782 = vsel %vm659, %v781, %v780
        %v784 = vmul.bf16 %v778, %v782
        %s785 = scalar_lea.vmem %s1, 20
        %v786 = vld [vmem:[%s785] sm:$0xf]
        %v788 = vcombine.high %v784, %v784
        %v790 = vunpack.c.l.s4 1983009808
        %v791 = vunpack.c.0.s8 %v790
        %v792 = vlaneseq
        %v793 = vshrl.u32 %v792, 7
        %v794 = vsub.s32 %v791, %v793
        %v795 = vrot.slane %v784, %v794
        %v797 = vunpack.c.l.s4 1983009808
        %v798 = vunpack.c.0.s8 %v797
        %v799 = vlaneseq
        %v800 = vshrl.u32 %v799, 7
        %v801 = vsub.s32 %v798, %v800
        %v802 = vrot.slane %v788, %v801
        %v803 = vcombine.high %v795, %v795
        %804 = vrot.lane.b32.xlu0 %v795, 127
        %v805 = vpop.permute.xlu0 %804
        %806 = vrot.lane.b32.xlu0 %v803, 127
        %v807 = vpop.permute.xlu0 %806
        %808 = vrot.lane.b32.xlu0 %v802, 127
        %v809 = vpop.permute.xlu0 %808
        %v810 = vsel %vm630, %v805, %v807
        %v811 = vsel %vm630, %v807, %v809
        %v813 = vsel %vm377, %v786, 0
        %v816 = vsel %vm381, %v810, 0
        %v819 = vsel %vm381, %v811, 0
        %821 = vmatprep.subr.bf16.mxu0 %v819
        %822 = vmatpush1.bf16.msra.mxu0 %v816
        %823 = vmatprep.subr.bf16.mxu0 0
        %824 = vmatpush1.bf16.msra.mxu0 0
        %825 = vmatprep.subr.bf16.mxu0 0
        %826 = vmatpush1.bf16.msra.mxu0 0
        %827 = vmatprep.subr.bf16.mxu0 0
        %828 = vmatpush1.bf16.msra.mxu0 0
        %829 = vmatprep.subr.bf16.mxu0 0
        %830 = vmatpush1.bf16.msra.mxu0 0
        %831 = vmatprep.subr.bf16.mxu0 0
        %832 = vmatpush1.bf16.msra.mxu0 0
        %833 = vmatprep.subr.bf16.mxu0 0
        %834 = vmatpush1.bf16.msra.mxu0 0
        %835 = vmatprep.subr.bf16.mxu0 0
        %836 = vmatpush1.bf16.msra.mxu0 0
        %837 = vmatprep.subr.bf16.mxu0 0
        %838 = vmatpush1.bf16.msra.mxu0 0
        %839 = vmatprep.subr.bf16.mxu0 0
        %840 = vmatpush1.bf16.msra.mxu0 0
        %841 = vmatprep.subr.bf16.mxu0 0
        %842 = vmatpush1.bf16.msra.mxu0 0
        %843 = vmatprep.subr.bf16.mxu0 0
        %844 = vmatpush1.bf16.msra.mxu0 0
        %845 = vmatprep.subr.bf16.mxu0 0
        %846 = vmatpush1.bf16.msra.mxu0 0
        %847 = vmatprep.subr.bf16.mxu0 0
        %848 = vmatpush1.bf16.msra.mxu0 0
        %849 = vmatprep.subr.bf16.mxu0 0
        %850 = vmatpush1.bf16.msra.mxu0 0
        %851 = vmatprep.subr.bf16.mxu0 0
        %852 = vmatpush1.bf16.msra.mxu0 0
        %853 = vmatprep.mubr.bf16.mxu0 0
        %854 = vmatmul.mubr.bf16.gmra.mrb[0].mxu0 %v813
        %v855 = vpop.f32.mrb[0].mxu0
        %v856 = vadd.f32 0.0, %v855
        %v857 = vpop.f32.mrb[0].mxu0
        %v858 = vadd.f32 0.0, %v857
        %v859 = vpop.f32.mrb[0].mxu0
        %v860 = vpop.f32.mrb[0].mxu0
        %861 = vdwg.mxu0
        %v862 = vadd.f32 %v776, %v856
        %v863 = vadd.f32 %v777, %v858
        %v864 = vld [vmem:[%s303 + $0x2] sm:$0x3f]
        %865 = vrot.lane.b32.xlu0 %v340, 15
        %v866 = vpop.permute.xlu0 %865
        %v867 = vrot.slane %v866, 6
        %v868 = vsel %vm571, %v867, %v866
        %v870 = vmul.bf16 %v864, %v868
        %s871 = scalar_lea.vmem %s1, 24
        %v872 = vld [vmem:[%s871] sm:$0xf]
        %v874 = vcombine.high %v870, %v870
        %v876 = vunpack.c.l.s4 1983009808
        %v877 = vunpack.c.0.s8 %v876
        %v878 = vlaneseq
        %v879 = vshrl.u32 %v878, 7
        %v880 = vsub.s32 %v877, %v879
        %v881 = vrot.slane %v870, %v880
        %v883 = vunpack.c.l.s4 1983009808
        %v884 = vunpack.c.0.s8 %v883
        %v885 = vlaneseq
        %v886 = vshrl.u32 %v885, 7
        %v887 = vsub.s32 %v884, %v886
        %v888 = vrot.slane %v874, %v887
        %v889 = vcombine.high %v881, %v881
        %890 = vrot.lane.b32.xlu0 %v881, 113
        %v891 = vpop.permute.xlu0 %890
        %892 = vrot.lane.b32.xlu0 %v889, 113
        %v893 = vpop.permute.xlu0 %892
        %894 = vrot.lane.b32.xlu0 %v888, 113
        %v895 = vpop.permute.xlu0 %894
        %v896 = vsel %vm542, %v891, %v893
        %v897 = vsel %vm542, %v893, %v895
        %v899 = vsel %vm377, %v872, 0
        %v902 = vsel %vm381, %v896, 0
        %v905 = vsel %vm381, %v897, 0
        %907 = vmatprep.subr.bf16.mxu0 %v905
        %908 = vmatpush1.bf16.msra.mxu0 %v902
        %909 = vmatprep.subr.bf16.mxu0 0
        %910 = vmatpush1.bf16.msra.mxu0 0
        %911 = vmatprep.subr.bf16.mxu0 0
        %912 = vmatpush1.bf16.msra.mxu0 0
        %913 = vmatprep.subr.bf16.mxu0 0
        %914 = vmatpush1.bf16.msra.mxu0 0
        %915 = vmatprep.subr.bf16.mxu0 0
        %916 = vmatpush1.bf16.msra.mxu0 0
        %917 = vmatprep.subr.bf16.mxu0 0
        %918 = vmatpush1.bf16.msra.mxu0 0
        %919 = vmatprep.subr.bf16.mxu0 0
        %920 = vmatpush1.bf16.msra.mxu0 0
        %921 = vmatprep.subr.bf16.mxu0 0
        %922 = vmatpush1.bf16.msra.mxu0 0
        %923 = vmatprep.subr.bf16.mxu0 0
        %924 = vmatpush1.bf16.msra.mxu0 0
        %925 = vmatprep.subr.bf16.mxu0 0
        %926 = vmatpush1.bf16.msra.mxu0 0
        %927 = vmatprep.subr.bf16.mxu0 0
        %928 = vmatpush1.bf16.msra.mxu0 0
        %929 = vmatprep.subr.bf16.mxu0 0
        %930 = vmatpush1.bf16.msra.mxu0 0
        %931 = vmatprep.subr.bf16.mxu0 0
        %932 = vmatpush1.bf16.msra.mxu0 0
        %933 = vmatprep.subr.bf16.mxu0 0
        %934 = vmatpush1.bf16.msra.mxu0 0
        %935 = vmatprep.subr.bf16.mxu0 0
        %936 = vmatpush1.bf16.msra.mxu0 0
        %937 = vmatprep.subr.bf16.mxu0 0
        %938 = vmatpush1.bf16.msra.mxu0 0
        %939 = vmatprep.mubr.bf16.mxu0 0
        %940 = vmatmul.mubr.bf16.gmra.mrb[0].mxu0 %v899
        %v941 = vpop.f32.mrb[0].mxu0
        %v942 = vadd.f32 0.0, %v941
        %v943 = vpop.f32.mrb[0].mxu0
        %v944 = vadd.f32 0.0, %v943
        %v945 = vpop.f32.mrb[0].mxu0
        %v946 = vpop.f32.mrb[0].mxu0
        %947 = vdwg.mxu0
        %v948 = vadd.f32 %v862, %v942
        %v949 = vadd.f32 %v863, %v944
        %v950 = vld [vmem:[%s303 + $0x2] sm:$0x3f]
        %s951 = scalar_lea.vmem %s1, 28
        %v952 = vld [vmem:[%s951] sm:$0xf]
        %v954 = vcombine.high %v950, %v950
        %v956 = vunpack.c.l.s4 1983009808
        %v957 = vunpack.c.0.s8 %v956
        %v958 = vlaneseq
        %v959 = vshrl.u32 %v958, 7
        %v960 = vsub.s32 %v957, %v959
        %v961 = vrot.slane %v950, %v960
        %v963 = vunpack.c.l.s4 1983009808
        %v964 = vunpack.c.0.s8 %v963
        %v965 = vlaneseq
        %v966 = vshrl.u32 %v965, 7
        %v967 = vsub.s32 %v964, %v966
        %v968 = vrot.slane %v954, %v967
        %v969 = vcombine.high %v961, %v961
        %970 = vrot.lane.b32.xlu0 %v961, 112
        %v971 = vpop.permute.xlu0 %970
        %972 = vrot.lane.b32.xlu0 %v969, 112
        %v973 = vpop.permute.xlu0 %972
        %974 = vrot.lane.b32.xlu0 %v968, 112
        %v975 = vpop.permute.xlu0 %974
        %vm976 = vcmask 916480
        %v977 = vsel %vm976, %v971, %v973
        %v978 = vsel %vm976, %v973, %v975
        %v980 = vsel %vm377, %v952, 0
        %v983 = vsel %vm381, %v977, 0
        %v986 = vsel %vm381, %v978, 0
        %988 = vmatprep.subr.bf16.mxu0 %v986
        %989 = vmatpush1.bf16.msra.mxu0 %v983
        %990 = vmatprep.subr.bf16.mxu0 0
        %991 = vmatpush1.bf16.msra.mxu0 0
        %992 = vmatprep.subr.bf16.mxu0 0
        %993 = vmatpush1.bf16.msra.mxu0 0
        %994 = vmatprep.subr.bf16.mxu0 0
        %995 = vmatpush1.bf16.msra.mxu0 0
        %996 = vmatprep.subr.bf16.mxu0 0
        %997 = vmatpush1.bf16.msra.mxu0 0
        %998 = vmatprep.subr.bf16.mxu0 0
        %999 = vmatpush1.bf16.msra.mxu0 0
        %1000 = vmatprep.subr.bf16.mxu0 0
        %1001 = vmatpush1.bf16.msra.mxu0 0
        %1002 = vmatprep.subr.bf16.mxu0 0
        %1003 = vmatpush1.bf16.msra.mxu0 0
        %1004 = vmatprep.subr.bf16.mxu0 0
        %1005 = vmatpush1.bf16.msra.mxu0 0
        %1006 = vmatprep.subr.bf16.mxu0 0
        %1007 = vmatpush1.bf16.msra.mxu0 0
        %1008 = vmatprep.subr.bf16.mxu0 0
        %1009 = vmatpush1.bf16.msra.mxu0 0
        %1010 = vmatprep.subr.bf16.mxu0 0
        %1011 = vmatpush1.bf16.msra.mxu0 0
        %1012 = vmatprep.subr.bf16.mxu0 0
        %1013 = vmatpush1.bf16.msra.mxu0 0
        %1014 = vmatprep.subr.bf16.mxu0 0
        %1015 = vmatpush1.bf16.msra.mxu0 0
        %1016 = vmatprep.subr.bf16.mxu0 0
        %1017 = vmatpush1.bf16.msra.mxu0 0
        %1018 = vmatprep.subr.bf16.mxu0 0
        %1019 = vmatpush1.bf16.msra.mxu0 0
        %1020 = vmatprep.mubr.bf16.mxu0 0
        %1021 = vmatmul.mubr.bf16.gmra.mrb[0].mxu0 %v980
        %v1022 = vpop.f32.mrb[0].mxu0
        %v1023 = vadd.f32 0.0, %v1022
        %v1024 = vpop.f32.mrb[0].mxu0
        %v1025 = vadd.f32 0.0, %v1024
        %v1026 = vpop.f32.mrb[0].mxu0
        %v1027 = vpop.f32.mrb[0].mxu0
        %1028 = vdwg.mxu0
        %v1029 = vadd.f32 %v948, %v1023
        %v1030 = vadd.f32 %v949, %v1025
        %v1031 = vld [vmem:[%s303 + $0x2] sm:$0x3f]
        %1032 = vrot.lane.b32.xlu0 %v538, 17
        %v1033 = vpop.permute.xlu0 %1032
        %v1034 = vrot.slane %v1033, 6
        %v1035 = vsel %vm452, %v1034, %v1033
        %v1037 = vmul.bf16 %v1031, %v1035
        %s1038 = scalar_lea.vmem %s1, 32
        %v1039 = vld [vmem:[%s1038] sm:$0xf]
        %v1041 = vcombine.high %v1037, %v1037
        %v1043 = vunpack.c.l.s4 1983009808
        %v1044 = vunpack.c.0.s8 %v1043
        %v1045 = vlaneseq
        %v1046 = vshrl.u32 %v1045, 7
        %v1047 = vsub.s32 %v1044, %v1046
        %v1048 = vrot.slane %v1037, %v1047
        %v1050 = vunpack.c.l.s4 1983009808
        %v1051 = vunpack.c.0.s8 %v1050
        %v1052 = vlaneseq
        %v1053 = vshrl.u32 %v1052, 7
        %v1054 = vsub.s32 %v1051, %v1053
        %v1055 = vrot.slane %v1041, %v1054
        %v1056 = vcombine.high %v1048, %v1048
        %1057 = vrot.lane.b32.xlu0 %v1048, 111
        %v1058 = vpop.permute.xlu0 %1057
        %1059 = vrot.lane.b32.xlu0 %v1056, 111
        %v1060 = vpop.permute.xlu0 %1059
        %1061 = vrot.lane.b32.xlu0 %v1055, 111
        %v1062 = vpop.permute.xlu0 %1061
        %v1063 = vsel %vm344, %v1058, %v1060
        %v1064 = vsel %vm344, %v1060, %v1062
        %v1066 = vsel %vm377, %v1039, 0
        %v1069 = vsel %vm381, %v1063, 0
        %v1072 = vsel %vm381, %v1064, 0
        %1074 = vmatprep.subr.bf16.mxu0 %v1072
        %1075 = vmatpush1.bf16.msra.mxu0 %v1069
        %1076 = vmatprep.subr.bf16.mxu0 0
        %1077 = vmatpush1.bf16.msra.mxu0 0
        %1078 = vmatprep.subr.bf16.mxu0 0
        %1079 = vmatpush1.bf16.msra.mxu0 0
        %1080 = vmatprep.subr.bf16.mxu0 0
        %1081 = vmatpush1.bf16.msra.mxu0 0
        %1082 = vmatprep.subr.bf16.mxu0 0
        %1083 = vmatpush1.bf16.msra.mxu0 0
        %1084 = vmatprep.subr.bf16.mxu0 0
        %1085 = vmatpush1.bf16.msra.mxu0 0
        %1086 = vmatprep.subr.bf16.mxu0 0
        %1087 = vmatpush1.bf16.msra.mxu0 0
        %1088 = vmatprep.subr.bf16.mxu0 0
        %1089 = vmatpush1.bf16.msra.mxu0 0
        %1090 = vmatprep.subr.bf16.mxu0 0
        %1091 = vmatpush1.bf16.msra.mxu0 0
        %1092 = vmatprep.subr.bf16.mxu0 0
        %1093 = vmatpush1.bf16.msra.mxu0 0
        %1094 = vmatprep.subr.bf16.mxu0 0
        %1095 = vmatpush1.bf16.msra.mxu0 0
        %1096 = vmatprep.subr.bf16.mxu0 0
        %1097 = vmatpush1.bf16.msra.mxu0 0
        %1098 = vmatprep.subr.bf16.mxu0 0
        %1099 = vmatpush1.bf16.msra.mxu0 0
        %1100 = vmatprep.subr.bf16.mxu0 0
        %1101 = vmatpush1.bf16.msra.mxu0 0
        %1102 = vmatprep.subr.bf16.mxu0 0
        %1103 = vmatpush1.bf16.msra.mxu0 0
        %1104 = vmatprep.subr.bf16.mxu0 0
        %1105 = vmatpush1.bf16.msra.mxu0 0
        %1106 = vmatprep.mubr.bf16.mxu0 0
        %1107 = vmatmul.mubr.bf16.gmra.mrb[0].mxu0 %v1066
        %v1108 = vpop.f32.mrb[0].mxu0
        %v1109 = vadd.f32 0.0, %v1108
        %v1110 = vpop.f32.mrb[0].mxu0
        %v1111 = vadd.f32 0.0, %v1110
        %v1112 = vpop.f32.mrb[0].mxu0
        %v1113 = vpop.f32.mrb[0].mxu0
        %1114 = vdwg.mxu0
        %v1115 = vadd.f32 %v1029, %v1109
        %v1116 = vadd.f32 %v1030, %v1111
        %v1117 = vld [vmem:[%s2] sm:$0xff]
        %1119 = vset.pattern.permute.xlu0 0
        %1120 = vperm.xlu0 %1119, %v1117
        %v1121 = vpop.permute.xlu0 %1120
        %v1123 = vadd.f32 %v1115, %v1121
        %v1124 = vadd.f32 %v1116, %v1121
        %v1125 = vmax.f32 %v1123, 0.0
        %v1126 = vmax.f32 %v1124, 0.0
        %v1127 = vpack.c.bf16 %v1125, %v1125
        %v1128 = vpack.c.bf16 %v1126, %v1126
        %1129 = vst [vmem:[#allocation2] sm:$0xf] 0
        %v1132 = vunpack.c.l.b16 %v1127
        %v1133 = vunpack.c.l.b16 %v1128
        %v1134 = vpack.c.b16 %v1133, %v1132
        %1136 = vst [vmem:[#allocation2 + $0x4] sm:$0xff] %v1134
        %1137 = vst [vmem:[#allocation2 + $0xc] sm:$0xf] 0
        %v1138 = vld [vmem:[%s303 + $0x2] sm:$0xf]
        %v1139 = vld [vmem:[%s5] sm:$0xf]
        %v1140 = vld [vmem:[%s6] sm:$0xff]
        %1142 = vset.pattern.permute.xlu0 0
        %1143 = vperm.xlu0 %1142, %v1140
        %v1144 = vpop.permute.xlu0 %1143
        %v1148 = vunpack.c.l.s4 1983009808
        %v1149 = vunpack.c.0.s8 %v1148
        %v1150 = vlaneseq
        %v1151 = vshrl.u32 %v1150, 7
        %v1152 = vsub.s32 %v1149, %v1151
        %v1153 = vrot.slane %v1138, %v1152
        %v1154 = vcombine.high %v1153, %v1153
        %v1156 = vsel %vm377, %v1139, 0
        %v1159 = vsel %vm381, %v1153, 0
        %v1162 = vsel %vm381, %v1154, 0
        %1164 = vmatprep.subr.bf16.mxu0 %v1162
        %1165 = vmatpush1.bf16.msra.mxu0 %v1159
        %1166 = vmatprep.subr.bf16.mxu0 0
        %1167 = vmatpush1.bf16.msra.mxu0 0
        %1168 = vmatprep.subr.bf16.mxu0 0
        %1169 = vmatpush1.bf16.msra.mxu0 0
        %1170 = vmatprep.subr.bf16.mxu0 0
        %1171 = vmatpush1.bf16.msra.mxu0 0
        %1172 = vmatprep.subr.bf16.mxu0 0
        %1173 = vmatpush1.bf16.msra.mxu0 0
        %1174 = vmatprep.subr.bf16.mxu0 0
        %1175 = vmatpush1.bf16.msra.mxu0 0
        %1176 = vmatprep.subr.bf16.mxu0 0
        %1177 = vmatpush1.bf16.msra.mxu0 0
        %1178 = vmatprep.subr.bf16.mxu0 0
        %1179 = vmatpush1.bf16.msra.mxu0 0
        %1180 = vmatprep.subr.bf16.mxu0 0
        %1181 = vmatpush1.bf16.msra.mxu0 0
        %1182 = vmatprep.subr.bf16.mxu0 0
        %1183 = vmatpush1.bf16.msra.mxu0 0
        %1184 = vmatprep.subr.bf16.mxu0 0
        %1185 = vmatpush1.bf16.msra.mxu0 0
        %1186 = vmatprep.subr.bf16.mxu0 0
        %1187 = vmatpush1.bf16.msra.mxu0 0
        %1188 = vmatprep.subr.bf16.mxu0 0
        %1189 = vmatpush1.bf16.msra.mxu0 0
        %1190 = vmatprep.subr.bf16.mxu0 0
        %1191 = vmatpush1.bf16.msra.mxu0 0
        %1192 = vmatprep.subr.bf16.mxu0 0
        %1193 = vmatpush1.bf16.msra.mxu0 0
        %1194 = vmatprep.subr.bf16.mxu0 0
        %1195 = vmatpush1.bf16.msra.mxu0 0
        %1196 = vmatprep.mubr.bf16.mxu0 0
        %1197 = vmatmul.mubr.bf16.gmra.mrb[0].mxu0 %v1156
        %v1198 = vpop.f32.mrb[0].mxu0
        %v1199 = vadd.f32 %v1144, %v1198
        %v1200 = vpop.f32.mrb[0].mxu0
        %v1201 = vadd.f32 %v1144, %v1200
        %v1202 = vpop.f32.mrb[0].mxu0
        %v1203 = vpop.f32.mrb[0].mxu0
        %1204 = vdwg.mxu0
        %v1205 = vld [vmem:[%s4] sm:$0xff]
        %1207 = vset.pattern.permute.xlu0 0
        %1208 = vperm.xlu0 %1207, %v1205
        %v1209 = vpop.permute.xlu0 %1208
        %v1211 = vadd.f32 %v1199, %v1209
        %v1212 = vadd.f32 %v1201, %v1209
        %v1213 = vld [vmem:[#allocation2] sm:$0xff]
        %v1214 = vld [vmem:[#allocation2 + $0x8] sm:$0xf]
        %v1215 = vunpack.c.l.b16 %v323
        %v1216 = vunpack.c.l.b16 %v330
        %v1217 = vpack.c.b16 %v1216, %v1215
        %1218 = vrot.lane.b32.xlu0 %v1217, 111
        %v1219 = vpop.permute.xlu0 %1218
        %v1220 = vrot.slane %v1219, 4
        %v1221 = vsel %vm344, %v1220, %v1219
        %v1224 = vmul.bf16 %v1213, %v1221
        %v1225 = vmul.bf16 %v1214, %v1220
        %v1226 = vld [vmem:[%s3] sm:$0xf]
        %v1229 = vunpack.c.l.b16 %v1224
        %v1230 = vunpack.c.h.b16 %v1224
        %v1231 = vunpack.c.l.b16 %v1225
        %v1232 = vpack.c.b16 %v1229, %v1229
        %v1233 = vpack.c.b16 %v1230, %v1230
        %v1234 = vpack.c.b16 %v1231, %v1231
        %1235 = vrot.lane.b32.xlu0 %v1232, 17
        %v1236 = vpop.permute.xlu0 %1235
        %1237 = vrot.lane.b32.xlu0 %v1233, 17
        %v1238 = vpop.permute.xlu0 %1237
        %1239 = vrot.lane.b32.xlu0 %v1234, 17
        %v1240 = vpop.permute.xlu0 %1239
        %v1241 = vsel %vm452, %v1236, %v1238
        %v1242 = vsel %vm452, %v1238, %v1240
        %vm1243 = vcmask 64512
        %v1245 = vsel %vm1243, %v1226, 0
        %vm1247 = vcmask 1043456
        %v1249 = vsel %vm1247, %v1241, 0
        %v1252 = vsel %vm1247, %v1242, 0
        %1254 = vmatprep.subr.bf16.mxu0 %v1252
        %1255 = vmatpush1.bf16.msra.mxu0 %v1249
        %1256 = vmatprep.subr.bf16.mxu0 0
        %1257 = vmatpush1.bf16.msra.mxu0 0
        %1258 = vmatprep.subr.bf16.mxu0 0
        %1259 = vmatpush1.bf16.msra.mxu0 0
        %1260 = vmatprep.subr.bf16.mxu0 0
        %1261 = vmatpush1.bf16.msra.mxu0 0
        %1262 = vmatprep.subr.bf16.mxu0 0
        %1263 = vmatpush1.bf16.msra.mxu0 0
        %1264 = vmatprep.subr.bf16.mxu0 0
        %1265 = vmatpush1.bf16.msra.mxu0 0
        %1266 = vmatprep.subr.bf16.mxu0 0
        %1267 = vmatpush1.bf16.msra.mxu0 0
        %1268 = vmatprep.subr.bf16.mxu0 0
        %1269 = vmatpush1.bf16.msra.mxu0 0
        %1270 = vmatprep.subr.bf16.mxu0 0
        %1271 = vmatpush1.bf16.msra.mxu0 0
        %1272 = vmatprep.subr.bf16.mxu0 0
        %1273 = vmatpush1.bf16.msra.mxu0 0
        %1274 = vmatprep.subr.bf16.mxu0 0
        %1275 = vmatpush1.bf16.msra.mxu0 0
        %1276 = vmatprep.subr.bf16.mxu0 0
        %1277 = vmatpush1.bf16.msra.mxu0 0
        %1278 = vmatprep.subr.bf16.mxu0 0
        %1279 = vmatpush1.bf16.msra.mxu0 0
        %1280 = vmatprep.subr.bf16.mxu0 0
        %1281 = vmatpush1.bf16.msra.mxu0 0
        %1282 = vmatprep.subr.bf16.mxu0 0
        %1283 = vmatpush1.bf16.msra.mxu0 0
        %1284 = vmatprep.subr.bf16.mxu0 0
        %1285 = vmatpush1.bf16.msra.mxu0 0
        %1286 = vmatprep.mubr.bf16.mxu0 0
        %1287 = vmatmul.mubr.bf16.gmra.mrb[0].mxu0 %v1245
        %v1288 = vpop.f32.mrb[0].mxu0
        %v1289 = vadd.f32 0.0, %v1288
        %v1290 = vpop.f32.mrb[0].mxu0
        %v1291 = vadd.f32 0.0, %v1290
        %v1292 = vpop.f32.mrb[0].mxu0
        %v1293 = vpop.f32.mrb[0].mxu0
        %1294 = vdwg.mxu0
        %v1295 = vadd.f32 %v1211, %v1289
        %v1296 = vadd.f32 %v1212, %v1291
        %v1297 = vld [vmem:[#allocation2] sm:$0xff]
        %v1298 = vld [vmem:[#allocation2 + $0x8] sm:$0xf]
        %s1299 = scalar_lea.vmem %s3, 4
        %v1300 = vld [vmem:[%s1299] sm:$0xf]
        %v1303 = vunpack.c.l.b16 %v1297
        %v1304 = vunpack.c.h.b16 %v1297
        %v1305 = vunpack.c.l.b16 %v1298
        %v1306 = vpack.c.b16 %v1303, %v1303
        %v1307 = vpack.c.b16 %v1304, %v1304
        %v1308 = vpack.c.b16 %v1305, %v1305
        %1309 = vrot.lane.b32.xlu0 %v1306, 16
        %v1310 = vpop.permute.xlu0 %1309
        %1311 = vrot.lane.b32.xlu0 %v1307, 16
        %v1312 = vpop.permute.xlu0 %1311
        %1313 = vrot.lane.b32.xlu0 %v1308, 16
        %v1314 = vpop.permute.xlu0 %1313
        %v1315 = vsel %vm374, %v1310, %v1312
        %v1316 = vsel %vm374, %v1312, %v1314
        %v1318 = vsel %vm1243, %v1300, 0
        %v1321 = vsel %vm1247, %v1315, 0
        %v1324 = vsel %vm1247, %v1316, 0
        %1326 = vmatprep.subr.bf16.mxu0 %v1324
        %1327 = vmatpush1.bf16.msra.mxu0 %v1321
        %1328 = vmatprep.subr.bf16.mxu0 0
        %1329 = vmatpush1.bf16.msra.mxu0 0
        %1330 = vmatprep.subr.bf16.mxu0 0
        %1331 = vmatpush1.bf16.msra.mxu0 0
        %1332 = vmatprep.subr.bf16.mxu0 0
        %1333 = vmatpush1.bf16.msra.mxu0 0
        %1334 = vmatprep.subr.bf16.mxu0 0
        %1335 = vmatpush1.bf16.msra.mxu0 0
        %1336 = vmatprep.subr.bf16.mxu0 0
        %1337 = vmatpush1.bf16.msra.mxu0 0
        %1338 = vmatprep.subr.bf16.mxu0 0
        %1339 = vmatpush1.bf16.msra.mxu0 0
        %1340 = vmatprep.subr.bf16.mxu0 0
        %1341 = vmatpush1.bf16.msra.mxu0 0
        %1342 = vmatprep.subr.bf16.mxu0 0
        %1343 = vmatpush1.bf16.msra.mxu0 0
        %1344 = vmatprep.subr.bf16.mxu0 0
        %1345 = vmatpush1.bf16.msra.mxu0 0
        %1346 = vmatprep.subr.bf16.mxu0 0
        %1347 = vmatpush1.bf16.msra.mxu0 0
        %1348 = vmatprep.subr.bf16.mxu0 0
        %1349 = vmatpush1.bf16.msra.mxu0 0
        %1350 = vmatprep.subr.bf16.mxu0 0
        %1351 = vmatpush1.bf16.msra.mxu0 0
        %1352 = vmatprep.subr.bf16.mxu0 0
        %1353 = vmatpush1.bf16.msra.mxu0 0
        %1354 = vmatprep.subr.bf16.mxu0 0
        %1355 = vmatpush1.bf16.msra.mxu0 0
        %1356 = vmatprep.subr.bf16.mxu0 0
        %1357 = vmatpush1.bf16.msra.mxu0 0
        %1358 = vmatprep.mubr.bf16.mxu0 0
        %1359 = vmatmul.mubr.bf16.gmra.mrb[0].mxu0 %v1318
        %v1360 = vpop.f32.mrb[0].mxu0
        %v1361 = vadd.f32 0.0, %v1360
        %v1362 = vpop.f32.mrb[0].mxu0
        %v1363 = vadd.f32 0.0, %v1362
        %v1364 = vpop.f32.mrb[0].mxu0
        %v1365 = vpop.f32.mrb[0].mxu0
        %1366 = vdwg.mxu0
        %v1367 = vadd.f32 %v1295, %v1361
        %v1368 = vadd.f32 %v1296, %v1363
        %v1369 = vunpack.c.l.b16 %v521
        %v1370 = vunpack.c.l.b16 %v528
        %v1371 = vpack.c.b16 %v1370, %v1369
        %1372 = vrot.lane.b32.xlu0 %v1371, 113
        %v1373 = vpop.permute.xlu0 %1372
        %v1374 = vrot.slane %v1373, 4
        %v1375 = vsel %vm542, %v1374, %v1373
        %v1378 = vmul.bf16 %v1297, %v1375
        %v1379 = vmul.bf16 %v1298, %v1374
        %s1380 = scalar_lea.vmem %s3, 8
        %v1381 = vld [vmem:[%s1380] sm:$0xf]
        %v1384 = vunpack.c.l.b16 %v1378
        %v1385 = vunpack.c.h.b16 %v1378
        %v1386 = vunpack.c.l.b16 %v1379
        %v1387 = vpack.c.b16 %v1384, %v1384
        %v1388 = vpack.c.b16 %v1385, %v1385
        %v1389 = vpack.c.b16 %v1386, %v1386
        %1390 = vrot.lane.b32.xlu0 %v1387, 15
        %v1391 = vpop.permute.xlu0 %1390
        %1392 = vrot.lane.b32.xlu0 %v1388, 15
        %v1393 = vpop.permute.xlu0 %1392
        %1394 = vrot.lane.b32.xlu0 %v1389, 15
        %v1395 = vpop.permute.xlu0 %1394
        %v1396 = vsel %vm571, %v1391, %v1393
        %v1397 = vsel %vm571, %v1393, %v1395
        %v1399 = vsel %vm1243, %v1381, 0
        %v1402 = vsel %vm1247, %v1396, 0
        %v1405 = vsel %vm1247, %v1397, 0
        %1407 = vmatprep.subr.bf16.mxu0 %v1405
        %1408 = vmatpush1.bf16.msra.mxu0 %v1402
        %1409 = vmatprep.subr.bf16.mxu0 0
        %1410 = vmatpush1.bf16.msra.mxu0 0
        %1411 = vmatprep.subr.bf16.mxu0 0
        %1412 = vmatpush1.bf16.msra.mxu0 0
        %1413 = vmatprep.subr.bf16.mxu0 0
        %1414 = vmatpush1.bf16.msra.mxu0 0
        %1415 = vmatprep.subr.bf16.mxu0 0
        %1416 = vmatpush1.bf16.msra.mxu0 0
        %1417 = vmatprep.subr.bf16.mxu0 0
        %1418 = vmatpush1.bf16.msra.mxu0 0
        %1419 = vmatprep.subr.bf16.mxu0 0
        %1420 = vmatpush1.bf16.msra.mxu0 0
        %1421 = vmatprep.subr.bf16.mxu0 0
        %1422 = vmatpush1.bf16.msra.mxu0 0
        %1423 = vmatprep.subr.bf16.mxu0 0
        %1424 = vmatpush1.bf16.msra.mxu0 0
        %1425 = vmatprep.subr.bf16.mxu0 0
        %1426 = vmatpush1.bf16.msra.mxu0 0
        %1427 = vmatprep.subr.bf16.mxu0 0
        %1428 = vmatpush1.bf16.msra.mxu0 0
        %1429 = vmatprep.subr.bf16.mxu0 0
        %1430 = vmatpush1.bf16.msra.mxu0 0
        %1431 = vmatprep.subr.bf16.mxu0 0
        %1432 = vmatpush1.bf16.msra.mxu0 0
        %1433 = vmatprep.subr.bf16.mxu0 0
        %1434 = vmatpush1.bf16.msra.mxu0 0
        %1435 = vmatprep.subr.bf16.mxu0 0
        %1436 = vmatpush1.bf16.msra.mxu0 0
        %1437 = vmatprep.subr.bf16.mxu0 0
        %1438 = vmatpush1.bf16.msra.mxu0 0
        %1439 = vmatprep.mubr.bf16.mxu0 0
        %1440 = vmatmul.mubr.bf16.gmra.mrb[0].mxu0 %v1399
        %v1441 = vpop.f32.mrb[0].mxu0
        %v1442 = vadd.f32 0.0, %v1441
        %v1443 = vpop.f32.mrb[0].mxu0
        %v1444 = vadd.f32 0.0, %v1443
        %v1445 = vpop.f32.mrb[0].mxu0
        %v1446 = vpop.f32.mrb[0].mxu0
        %1447 = vdwg.mxu0
        %v1448 = vadd.f32 %v1367, %v1442
        %v1449 = vadd.f32 %v1368, %v1444
        %v1450 = vld [vmem:[#allocation2] sm:$0xff]
        %v1451 = vld [vmem:[#allocation2 + $0x8] sm:$0xf]
        %1452 = vrot.lane.b32.xlu0 %v1217, 127
        %v1453 = vpop.permute.xlu0 %1452
        %v1454 = vrot.slane %v1453, 4
        %v1455 = vsel %vm630, %v1454, %v1453
        %v1458 = vmul.bf16 %v1450, %v1455
        %v1459 = vmul.bf16 %v1451, %v1454
        %s1460 = scalar_lea.vmem %s3, 12
        %v1461 = vld [vmem:[%s1460] sm:$0xf]
        %v1464 = vunpack.c.l.b16 %v1458
        %v1465 = vunpack.c.h.b16 %v1458
        %v1466 = vunpack.c.l.b16 %v1459
        %v1467 = vpack.c.b16 %v1464, %v1464
        %v1468 = vpack.c.b16 %v1465, %v1465
        %v1469 = vpack.c.b16 %v1466, %v1466
        %1470 = vrot.lane.b32.xlu0 %v1467, 1
        %v1471 = vpop.permute.xlu0 %1470
        %1472 = vrot.lane.b32.xlu0 %v1468, 1
        %v1473 = vpop.permute.xlu0 %1472
        %1474 = vrot.lane.b32.xlu0 %v1469, 1
        %v1475 = vpop.permute.xlu0 %1474
        %v1476 = vsel %vm659, %v1471, %v1473
        %v1477 = vsel %vm659, %v1473, %v1475
        %v1479 = vsel %vm1243, %v1461, 0
        %v1482 = vsel %vm1247, %v1476, 0
        %v1485 = vsel %vm1247, %v1477, 0
        %1487 = vmatprep.subr.bf16.mxu0 %v1485
        %1488 = vmatpush1.bf16.msra.mxu0 %v1482
        %1489 = vmatprep.subr.bf16.mxu0 0
        %1490 = vmatpush1.bf16.msra.mxu0 0
        %1491 = vmatprep.subr.bf16.mxu0 0
        %1492 = vmatpush1.bf16.msra.mxu0 0
        %1493 = vmatprep.subr.bf16.mxu0 0
        %1494 = vmatpush1.bf16.msra.mxu0 0
        %1495 = vmatprep.subr.bf16.mxu0 0
        %1496 = vmatpush1.bf16.msra.mxu0 0
        %1497 = vmatprep.subr.bf16.mxu0 0
        %1498 = vmatpush1.bf16.msra.mxu0 0
        %1499 = vmatprep.subr.bf16.mxu0 0
        %1500 = vmatpush1.bf16.msra.mxu0 0
        %1501 = vmatprep.subr.bf16.mxu0 0
        %1502 = vmatpush1.bf16.msra.mxu0 0
        %1503 = vmatprep.subr.bf16.mxu0 0
        %1504 = vmatpush1.bf16.msra.mxu0 0
        %1505 = vmatprep.subr.bf16.mxu0 0
        %1506 = vmatpush1.bf16.msra.mxu0 0
        %1507 = vmatprep.subr.bf16.mxu0 0
        %1508 = vmatpush1.bf16.msra.mxu0 0
        %1509 = vmatprep.subr.bf16.mxu0 0
        %1510 = vmatpush1.bf16.msra.mxu0 0
        %1511 = vmatprep.subr.bf16.mxu0 0
        %1512 = vmatpush1.bf16.msra.mxu0 0
        %1513 = vmatprep.subr.bf16.mxu0 0
        %1514 = vmatpush1.bf16.msra.mxu0 0
        %1515 = vmatprep.subr.bf16.mxu0 0
        %1516 = vmatpush1.bf16.msra.mxu0 0
        %1517 = vmatprep.subr.bf16.mxu0 0
        %1518 = vmatpush1.bf16.msra.mxu0 0
        %1519 = vmatprep.mubr.bf16.mxu0 0
        %1520 = vmatmul.mubr.bf16.gmra.mrb[0].mxu0 %v1479
        %v1521 = vpop.f32.mrb[0].mxu0
        %v1522 = vadd.f32 0.0, %v1521
        %v1523 = vpop.f32.mrb[0].mxu0
        %v1524 = vadd.f32 0.0, %v1523
        %v1525 = vpop.f32.mrb[0].mxu0
        %v1526 = vpop.f32.mrb[0].mxu0
        %1527 = vdwg.mxu0
        %v1528 = vadd.f32 %v1448, %v1522
        %v1529 = vadd.f32 %v1449, %v1524
        %v1530 = vld [vmem:[#allocation2 + $0x4] sm:$0xff]
        %s1531 = scalar_lea.vmem %s3, 16
        %v1532 = vld [vmem:[%s1531] sm:$0xf]
        %v1534 = vunpack.c.l.b16 %v1530
        %v1535 = vunpack.c.h.b16 %v1530
        %v1536 = vpack.c.b16 %v1534, %v1534
        %v1537 = vpack.c.b16 %v1535, %v1535
        %v1539 = vsel %vm1243, %v1532, 0
        %v1542 = vsel %vm1247, %v1536, 0
        %v1545 = vsel %vm1247, %v1537, 0
        %1547 = vmatprep.subr.bf16.mxu0 %v1545
        %1548 = vmatpush1.bf16.msra.mxu0 %v1542
        %1549 = vmatprep.subr.bf16.mxu0 0
        %1550 = vmatpush1.bf16.msra.mxu0 0
        %1551 = vmatprep.subr.bf16.mxu0 0
        %1552 = vmatpush1.bf16.msra.mxu0 0
        %1553 = vmatprep.subr.bf16.mxu0 0
        %1554 = vmatpush1.bf16.msra.mxu0 0
        %1555 = vmatprep.subr.bf16.mxu0 0
        %1556 = vmatpush1.bf16.msra.mxu0 0
        %1557 = vmatprep.subr.bf16.mxu0 0
        %1558 = vmatpush1.bf16.msra.mxu0 0
        %1559 = vmatprep.subr.bf16.mxu0 0
        %1560 = vmatpush1.bf16.msra.mxu0 0
        %1561 = vmatprep.subr.bf16.mxu0 0
        %1562 = vmatpush1.bf16.msra.mxu0 0
        %1563 = vmatprep.subr.bf16.mxu0 0
        %1564 = vmatpush1.bf16.msra.mxu0 0
        %1565 = vmatprep.subr.bf16.mxu0 0
        %1566 = vmatpush1.bf16.msra.mxu0 0
        %1567 = vmatprep.subr.bf16.mxu0 0
        %1568 = vmatpush1.bf16.msra.mxu0 0
        %1569 = vmatprep.subr.bf16.mxu0 0
        %1570 = vmatpush1.bf16.msra.mxu0 0
        %1571 = vmatprep.subr.bf16.mxu0 0
        %1572 = vmatpush1.bf16.msra.mxu0 0
        %1573 = vmatprep.subr.bf16.mxu0 0
        %1574 = vmatpush1.bf16.msra.mxu0 0
        %1575 = vmatprep.subr.bf16.mxu0 0
        %1576 = vmatpush1.bf16.msra.mxu0 0
        %1577 = vmatprep.subr.bf16.mxu0 0
        %1578 = vmatpush1.bf16.msra.mxu0 0
        %1579 = vmatprep.mubr.bf16.mxu0 0
        %1580 = vmatmul.mubr.bf16.gmra.mrb[0].mxu0 %v1539
        %v1581 = vpop.f32.mrb[0].mxu0
        %v1582 = vadd.f32 0.0, %v1581
        %v1583 = vpop.f32.mrb[0].mxu0
        %v1584 = vadd.f32 0.0, %v1583
        %v1585 = vpop.f32.mrb[0].mxu0
        %v1586 = vpop.f32.mrb[0].mxu0
        %1587 = vdwg.mxu0
        %v1588 = vadd.f32 %v1528, %v1582
        %v1589 = vadd.f32 %v1529, %v1584
        %v1590 = vld [vmem:[#allocation2 + $0x4] sm:$0xff]
        %v1591 = vld [vmem:[#allocation2 + $0xc] sm:$0xf]
        %1592 = vrot.lane.b32.xlu0 %v1371, 1
        %v1593 = vpop.permute.xlu0 %1592
        %v1594 = vrot.slane %v1593, 4
        %v1595 = vsel %vm659, %v1594, %v1593
        %v1598 = vmul.bf16 %v1590, %v1595
        %v1599 = vmul.bf16 %v1591, %v1594
        %s1600 = scalar_lea.vmem %s3, 20
        %v1601 = vld [vmem:[%s1600] sm:$0xf]
        %v1604 = vunpack.c.l.b16 %v1598
        %v1605 = vunpack.c.h.b16 %v1598
        %v1606 = vunpack.c.l.b16 %v1599
        %v1607 = vpack.c.b16 %v1604, %v1604
        %v1608 = vpack.c.b16 %v1605, %v1605
        %v1609 = vpack.c.b16 %v1606, %v1606
        %1610 = vrot.lane.b32.xlu0 %v1607, 127
        %v1611 = vpop.permute.xlu0 %1610
        %1612 = vrot.lane.b32.xlu0 %v1608, 127
        %v1613 = vpop.permute.xlu0 %1612
        %1614 = vrot.lane.b32.xlu0 %v1609, 127
        %v1615 = vpop.permute.xlu0 %1614
        %v1616 = vsel %vm630, %v1611, %v1613
        %v1617 = vsel %vm630, %v1613, %v1615
        %v1619 = vsel %vm1243, %v1601, 0
        %v1622 = vsel %vm1247, %v1616, 0
        %v1625 = vsel %vm1247, %v1617, 0
        %1627 = vmatprep.subr.bf16.mxu0 %v1625
        %1628 = vmatpush1.bf16.msra.mxu0 %v1622
        %1629 = vmatprep.subr.bf16.mxu0 0
        %1630 = vmatpush1.bf16.msra.mxu0 0
        %1631 = vmatprep.subr.bf16.mxu0 0
        %1632 = vmatpush1.bf16.msra.mxu0 0
        %1633 = vmatprep.subr.bf16.mxu0 0
        %1634 = vmatpush1.bf16.msra.mxu0 0
        %1635 = vmatprep.subr.bf16.mxu0 0
        %1636 = vmatpush1.bf16.msra.mxu0 0
        %1637 = vmatprep.subr.bf16.mxu0 0
        %1638 = vmatpush1.bf16.msra.mxu0 0
        %1639 = vmatprep.subr.bf16.mxu0 0
        %1640 = vmatpush1.bf16.msra.mxu0 0
        %1641 = vmatprep.subr.bf16.mxu0 0
        %1642 = vmatpush1.bf16.msra.mxu0 0
        %1643 = vmatprep.subr.bf16.mxu0 0
        %1644 = vmatpush1.bf16.msra.mxu0 0
        %1645 = vmatprep.subr.bf16.mxu0 0
        %1646 = vmatpush1.bf16.msra.mxu0 0
        %1647 = vmatprep.subr.bf16.mxu0 0
        %1648 = vmatpush1.bf16.msra.mxu0 0
        %1649 = vmatprep.subr.bf16.mxu0 0
        %1650 = vmatpush1.bf16.msra.mxu0 0
        %1651 = vmatprep.subr.bf16.mxu0 0
        %1652 = vmatpush1.bf16.msra.mxu0 0
        %1653 = vmatprep.subr.bf16.mxu0 0
        %1654 = vmatpush1.bf16.msra.mxu0 0
        %1655 = vmatprep.subr.bf16.mxu0 0
        %1656 = vmatpush1.bf16.msra.mxu0 0
        %1657 = vmatprep.subr.bf16.mxu0 0
        %1658 = vmatpush1.bf16.msra.mxu0 0
        %1659 = vmatprep.mubr.bf16.mxu0 0
        %1660 = vmatmul.mubr.bf16.gmra.mrb[0].mxu0 %v1619
        %v1661 = vpop.f32.mrb[0].mxu0
        %v1662 = vadd.f32 0.0, %v1661
        %v1663 = vpop.f32.mrb[0].mxu0
        %v1664 = vadd.f32 0.0, %v1663
        %v1665 = vpop.f32.mrb[0].mxu0
        %v1666 = vpop.f32.mrb[0].mxu0
        %1667 = vdwg.mxu0
        %v1668 = vadd.f32 %v1588, %v1662
        %v1669 = vadd.f32 %v1589, %v1664
        %1670 = vrot.lane.b32.xlu0 %v1217, 15
        %v1671 = vpop.permute.xlu0 %1670
        %v1672 = vrot.slane %v1671, 4
        %v1673 = vsel %vm571, %v1672, %v1671
        %v1676 = vmul.bf16 %v1590, %v1673
        %v1677 = vmul.bf16 %v1591, %v1672
        %s1678 = scalar_lea.vmem %s3, 24
        %v1679 = vld [vmem:[%s1678] sm:$0xf]
        %v1682 = vunpack.c.l.b16 %v1676
        %v1683 = vunpack.c.h.b16 %v1676
        %v1684 = vunpack.c.l.b16 %v1677
        %v1685 = vpack.c.b16 %v1682, %v1682
        %v1686 = vpack.c.b16 %v1683, %v1683
        %v1687 = vpack.c.b16 %v1684, %v1684
        %1688 = vrot.lane.b32.xlu0 %v1685, 113
        %v1689 = vpop.permute.xlu0 %1688
        %1690 = vrot.lane.b32.xlu0 %v1686, 113
        %v1691 = vpop.permute.xlu0 %1690
        %1692 = vrot.lane.b32.xlu0 %v1687, 113
        %v1693 = vpop.permute.xlu0 %1692
        %v1694 = vsel %vm542, %v1689, %v1691
        %v1695 = vsel %vm542, %v1691, %v1693
        %v1697 = vsel %vm1243, %v1679, 0
        %v1700 = vsel %vm1247, %v1694, 0
        %v1703 = vsel %vm1247, %v1695, 0
        %1705 = vmatprep.subr.bf16.mxu0 %v1703
        %1706 = vmatpush1.bf16.msra.mxu0 %v1700
        %1707 = vmatprep.subr.bf16.mxu0 0
        %1708 = vmatpush1.bf16.msra.mxu0 0
        %1709 = vmatprep.subr.bf16.mxu0 0
        %1710 = vmatpush1.bf16.msra.mxu0 0
        %1711 = vmatprep.subr.bf16.mxu0 0
        %1712 = vmatpush1.bf16.msra.mxu0 0
        %1713 = vmatprep.subr.bf16.mxu0 0
        %1714 = vmatpush1.bf16.msra.mxu0 0
        %1715 = vmatprep.subr.bf16.mxu0 0
        %1716 = vmatpush1.bf16.msra.mxu0 0
        %1717 = vmatprep.subr.bf16.mxu0 0
        %1718 = vmatpush1.bf16.msra.mxu0 0
        %1719 = vmatprep.subr.bf16.mxu0 0
        %1720 = vmatpush1.bf16.msra.mxu0 0
        %1721 = vmatprep.subr.bf16.mxu0 0
        %1722 = vmatpush1.bf16.msra.mxu0 0
        %1723 = vmatprep.subr.bf16.mxu0 0
        %1724 = vmatpush1.bf16.msra.mxu0 0
        %1725 = vmatprep.subr.bf16.mxu0 0
        %1726 = vmatpush1.bf16.msra.mxu0 0
        %1727 = vmatprep.subr.bf16.mxu0 0
        %1728 = vmatpush1.bf16.msra.mxu0 0
        %1729 = vmatprep.subr.bf16.mxu0 0
        %1730 = vmatpush1.bf16.msra.mxu0 0
        %1731 = vmatprep.subr.bf16.mxu0 0
        %1732 = vmatpush1.bf16.msra.mxu0 0
        %1733 = vmatprep.subr.bf16.mxu0 0
        %1734 = vmatpush1.bf16.msra.mxu0 0
        %1735 = vmatprep.subr.bf16.mxu0 0
        %1736 = vmatpush1.bf16.msra.mxu0 0
        %1737 = vmatprep.mubr.bf16.mxu0 0
        %1738 = vmatmul.mubr.bf16.gmra.mrb[0].mxu0 %v1697
        %v1739 = vpop.f32.mrb[0].mxu0
        %v1740 = vadd.f32 0.0, %v1739
        %v1741 = vpop.f32.mrb[0].mxu0
        %v1742 = vadd.f32 0.0, %v1741
        %v1743 = vpop.f32.mrb[0].mxu0
        %v1744 = vpop.f32.mrb[0].mxu0
        %1745 = vdwg.mxu0
        %v1746 = vadd.f32 %v1668, %v1740
        %v1747 = vadd.f32 %v1669, %v1742
        %s1748 = scalar_lea.vmem %s3, 28
        %v1749 = vld [vmem:[%s1748] sm:$0xf]
        %v1752 = vunpack.c.l.b16 %v1590
        %v1753 = vunpack.c.h.b16 %v1590
        %v1754 = vunpack.c.l.b16 %v1591
        %v1755 = vpack.c.b16 %v1752, %v1752
        %v1756 = vpack.c.b16 %v1753, %v1753
        %v1757 = vpack.c.b16 %v1754, %v1754
        %1758 = vrot.lane.b32.xlu0 %v1755, 112
        %v1759 = vpop.permute.xlu0 %1758
        %1760 = vrot.lane.b32.xlu0 %v1756, 112
        %v1761 = vpop.permute.xlu0 %1760
        %1762 = vrot.lane.b32.xlu0 %v1757, 112
        %v1763 = vpop.permute.xlu0 %1762
        %v1764 = vsel %vm976, %v1759, %v1761
        %v1765 = vsel %vm976, %v1761, %v1763
        %v1767 = vsel %vm1243, %v1749, 0
        %v1770 = vsel %vm1247, %v1764, 0
        %v1773 = vsel %vm1247, %v1765, 0
        %1775 = vmatprep.subr.bf16.mxu0 %v1773
        %1776 = vmatpush1.bf16.msra.mxu0 %v1770
        %1777 = vmatprep.subr.bf16.mxu0 0
        %1778 = vmatpush1.bf16.msra.mxu0 0
        %1779 = vmatprep.subr.bf16.mxu0 0
        %1780 = vmatpush1.bf16.msra.mxu0 0
        %1781 = vmatprep.subr.bf16.mxu0 0
        %1782 = vmatpush1.bf16.msra.mxu0 0
        %1783 = vmatprep.subr.bf16.mxu0 0
        %1784 = vmatpush1.bf16.msra.mxu0 0
        %1785 = vmatprep.subr.bf16.mxu0 0
        %1786 = vmatpush1.bf16.msra.mxu0 0
        %1787 = vmatprep.subr.bf16.mxu0 0
        %1788 = vmatpush1.bf16.msra.mxu0 0
        %1789 = vmatprep.subr.bf16.mxu0 0
        %1790 = vmatpush1.bf16.msra.mxu0 0
        %1791 = vmatprep.subr.bf16.mxu0 0
        %1792 = vmatpush1.bf16.msra.mxu0 0
        %1793 = vmatprep.subr.bf16.mxu0 0
        %1794 = vmatpush1.bf16.msra.mxu0 0
        %1795 = vmatprep.subr.bf16.mxu0 0
        %1796 = vmatpush1.bf16.msra.mxu0 0
        %1797 = vmatprep.subr.bf16.mxu0 0
        %1798 = vmatpush1.bf16.msra.mxu0 0
        %1799 = vmatprep.subr.bf16.mxu0 0
        %1800 = vmatpush1.bf16.msra.mxu0 0
        %1801 = vmatprep.subr.bf16.mxu0 0
        %1802 = vmatpush1.bf16.msra.mxu0 0
        %1803 = vmatprep.subr.bf16.mxu0 0
        %1804 = vmatpush1.bf16.msra.mxu0 0
        %1805 = vmatprep.subr.bf16.mxu0 0
        %1806 = vmatpush1.bf16.msra.mxu0 0
        %1807 = vmatprep.mubr.bf16.mxu0 0
        %1808 = vmatmul.mubr.bf16.gmra.mrb[0].mxu0 %v1767
        %v1809 = vpop.f32.mrb[0].mxu0
        %v1810 = vadd.f32 0.0, %v1809
        %v1811 = vpop.f32.mrb[0].mxu0
        %v1812 = vadd.f32 0.0, %v1811
        %v1813 = vpop.f32.mrb[0].mxu0
        %v1814 = vpop.f32.mrb[0].mxu0
        %1815 = vdwg.mxu0
        %v1816 = vadd.f32 %v1746, %v1810
        %v1817 = vadd.f32 %v1747, %v1812
        %1818 = vrot.lane.b32.xlu0 %v1371, 17
        %v1819 = vpop.permute.xlu0 %1818
        %v1820 = vrot.slane %v1819, 4
        %v1821 = vsel %vm452, %v1820, %v1819
        %v1824 = vmul.bf16 %v1590, %v1821
        %v1825 = vmul.bf16 %v1591, %v1820
        %s1826 = scalar_lea.vmem %s3, 32
        %v1827 = vld [vmem:[%s1826] sm:$0xf]
        %v1830 = vunpack.c.l.b16 %v1824
        %v1831 = vunpack.c.h.b16 %v1824
        %v1832 = vunpack.c.l.b16 %v1825
        %v1833 = vpack.c.b16 %v1830, %v1830
        %v1834 = vpack.c.b16 %v1831, %v1831
        %v1835 = vpack.c.b16 %v1832, %v1832
        %1836 = vrot.lane.b32.xlu0 %v1833, 111
        %v1837 = vpop.permute.xlu0 %1836
        %1838 = vrot.lane.b32.xlu0 %v1834, 111
        %v1839 = vpop.permute.xlu0 %1838
        %1840 = vrot.lane.b32.xlu0 %v1835, 111
        %v1841 = vpop.permute.xlu0 %1840
        %v1842 = vsel %vm344, %v1837, %v1839
        %v1843 = vsel %vm344, %v1839, %v1841
        %v1845 = vsel %vm1243, %v1827, 0
        %v1848 = vsel %vm1247, %v1842, 0
        %v1851 = vsel %vm1247, %v1843, 0
        %1853 = vmatprep.subr.bf16.mxu0 %v1851
        %1854 = vmatpush1.bf16.msra.mxu0 %v1848
        %1855 = vmatprep.subr.bf16.mxu0 0
        %1856 = vmatpush1.bf16.msra.mxu0 0
        %1857 = vmatprep.subr.bf16.mxu0 0
        %1858 = vmatpush1.bf16.msra.mxu0 0
        %1859 = vmatprep.subr.bf16.mxu0 0
        %1860 = vmatpush1.bf16.msra.mxu0 0
        %1861 = vmatprep.subr.bf16.mxu0 0
        %1862 = vmatpush1.bf16.msra.mxu0 0
        %1863 = vmatprep.subr.bf16.mxu0 0
        %1864 = vmatpush1.bf16.msra.mxu0 0
        %1865 = vmatprep.subr.bf16.mxu0 0
        %1866 = vmatpush1.bf16.msra.mxu0 0
        %1867 = vmatprep.subr.bf16.mxu0 0
        %1868 = vmatpush1.bf16.msra.mxu0 0
        %1869 = vmatprep.subr.bf16.mxu0 0
        %1870 = vmatpush1.bf16.msra.mxu0 0
        %1871 = vmatprep.subr.bf16.mxu0 0
        %1872 = vmatpush1.bf16.msra.mxu0 0
        %1873 = vmatprep.subr.bf16.mxu0 0
        %1874 = vmatpush1.bf16.msra.mxu0 0
        %1875 = vmatprep.subr.bf16.mxu0 0
        %1876 = vmatpush1.bf16.msra.mxu0 0
        %1877 = vmatprep.subr.bf16.mxu0 0
        %1878 = vmatpush1.bf16.msra.mxu0 0
        %1879 = vmatprep.subr.bf16.mxu0 0
        %1880 = vmatpush1.bf16.msra.mxu0 0
        %1881 = vmatprep.subr.bf16.mxu0 0
        %1882 = vmatpush1.bf16.msra.mxu0 0
        %1883 = vmatprep.subr.bf16.mxu0 0
        %1884 = vmatpush1.bf16.msra.mxu0 0
        %1885 = vmatprep.mubr.bf16.mxu0 0
        %1886 = vmatmul.mubr.bf16.gmra.mrb[0].mxu0 %v1845
        %v1887 = vpop.f32.mrb[0].mxu0
        %v1888 = vadd.f32 0.0, %v1887
        %v1889 = vpop.f32.mrb[0].mxu0
        %v1890 = vadd.f32 0.0, %v1889
        %v1891 = vpop.f32.mrb[0].mxu0
        %v1892 = vpop.f32.mrb[0].mxu0
        %1893 = vdwg.mxu0
        %v1894 = vadd.f32 %v1816, %v1888
        %v1895 = vadd.f32 %v1817, %v1890
        %v1896 = vmax.f32 %v1894, 0.0
        %v1897 = vmax.f32 %v1895, 0.0
        %v1898 = vpack.c.bf16 %v1896, %v1896
        %v1899 = vpack.c.bf16 %v1897, %v1897
        %v1902 = vunpack.c.l.b16 %v1898
        %v1903 = vunpack.c.l.b16 %v1899
        %v1904 = vpack.c.b16 %v1903, %v1902
        %1906 = vst [vmem:[%s298] sm:$0xff] %v1904
        %s1907 = sand.u32 %s203, 1
        %s1908 = scalar_lea.sflag [#allocation4], %s1907
        %s1909 = sand.u32 %s203, 1
        %s1910 = smul.addr %s1909, 8
        %s1911 = scalar_lea.vmem [#allocation3], %s1910
        // Predicated region
        $region53: #{tpu_custom_call.1} parent=51 // pred_check
          %p1912 = pneg %p213
        $region54: #{tpu_custom_call.1} parent=51 // pred_check_branch
          %1914 = sbr.rel (%p1912) target = $region56
        $region55: #{tpu_custom_call.1} parent=51 // pred_region
          %s1916 = ssub.s32 128, 128
          %1917 = vsyncadd %s1908, %s1916
          %s1918 = smul.addr %s22, 2
          %s1919 = smul.addr %s1918, 64
          %s1920 = scalar_lea.hbm %s8, %s1919
          %s1922 = sshll.u32 %s1911, 4
          %s1923 = int_to_ptr.vmem [resolvable:$true] %s1922
          %1925 = dma.vmem_to_hbm [thread:$0]  %s1923, 128, %s1920, %s1908
        $region56: #{tpu_custom_call.1} parent=51 // pred_fallthru
          _
      $region52: #{tpu_custom_call.1} parent=5 // pred_fallthru
        _
      %p1926 = scmp.le.s32.totalorder 2, %s17
      // Predicated region
      $region57: #{tpu_custom_call.1} parent=5 // pred_check
        %p1927 = pneg %p1926
      $region58: #{tpu_custom_call.1} parent=5 // pred_check_branch
        %1929 = sbr.rel (%p1927) target = $region60
      $region59: #{tpu_custom_call.1} parent=5 // pred_region
        %s1930 = ssub.s32 %s17, 2
        // Predicated region
        $region61: #{tpu_custom_call.1} parent=59 // pred_check
          %p1931 = pneg %p219
        $region62: #{tpu_custom_call.1} parent=59 // pred_check_branch
          %1933 = sbr.rel (%p1931) target = $region64
        $region63: #{tpu_custom_call.1} parent=59 // pred_region
          %s1934 = sand.u32 %s204, 1
          %s1935 = scalar_lea.sflag [#allocation4], %s1934
          %s1936 = sand.u32 %s204, 1
          %s1937 = smul.addr %s1936, 8
          %s1938 = scalar_lea.vmem [#allocation3], %s1937
          %1939 = dma.done %s1935, 128
        $region64: #{tpu_custom_call.1} parent=59 // pred_fallthru
          _
      $region60: #{tpu_custom_call.1} parent=5 // pred_fallthru
        _
    $region6: #{tpu_custom_call.1} parent=1 // loop_footer
      %s21 = sadd.s32 1, %s17
    $region7: #{tpu_custom_call.1} parent=1 // loop_footer_branch
      %16 = sbr.rel target = $region3
    $region8: #{tpu_custom_call.1} parent=1 // loop_exit
      _
    %1940 = vsyncpa [#allocation4], 1
    %s1941 = scalar_lea.sflag [#allocation4], 1
    %1942 = vsyncpa %s1941, 1

</llo_original>
